<compile_context>
chip_gen: v7x
topology: tpu7x:2x2x1
jax: 0.10.0
libtpu: 0.0.40
codegen_flags: <defaults>
</compile_context>

<pallas_src>
import functools

import jax
import jax.numpy as jnp
from jax.experimental import pallas as pl
from jax.experimental.pallas import tpu as pltpu

LATENT = 20    # latent_vector_length in the PyTorch code
HIDDEN = 100


def _round_up(v, m):
    return ((v + m - 1) // m) * m


def fused_vertical_kernel(num_clients,
                          x_ref,             # (C, TB, fpc)   bf16
                          cw1_ref, cb1_ref,  # (C, fpc, 100) bf16 | (C, 1, 100) f32
                          cw2_ref, cb2_ref,  # (C, 100, 20)  bf16 | (C, 1, 20)  f32
                          sw1_ref, sb1_ref,  # (C, 20, 100)  bf16 | (1, 100)    f32
                          sw2_ref, sb2_ref,  # (100, Kp)     bf16 | (1, Kp)     f32
                          out_ref):          # (TB, Kp)      f32
    tb = x_ref.shape[1]

    # Server pre-activation accumulator: bias + sum_c z_c @ sw1[c]
    # (the concat of client embeddings is folded into the server's first Linear).
    server_pre = jnp.broadcast_to(sb1_ref[...], (tb, HIDDEN))          # f32 (TB, 100)

    # num_clients is a small constant -> static unroll keeps all client weights resident.
    # TODO(synk): if num_clients grows large, move this loop to an "arbitrary" grid axis
    # with per-client weight BlockSpecs and a VMEM scratch accumulator.
    for c in range(num_clients):
        xc = x_ref[c]                                                   # (TB, fpc) bf16
        h = jnp.dot(xc, cw1_ref[c], preferred_element_type=jnp.float32) + cb1_ref[c]
        h = jnp.maximum(h, 0.0)                                         # ReLU, f32 (TB, 100)
        z = jnp.dot(h.astype(jnp.bfloat16), cw2_ref[c],
                    preferred_element_type=jnp.float32) + cb2_ref[c]
        z = jnp.maximum(z, 0.0)                                         # ReLU, f32 (TB, 20)
        server_pre = server_pre + jnp.dot(z.astype(jnp.bfloat16), sw1_ref[c],
                                          preferred_element_type=jnp.float32)

    hs = jnp.maximum(server_pre, 0.0)                                   # ReLU (TB, 100)
    logits = jnp.dot(hs.astype(jnp.bfloat16), sw2_ref[...],
                     preferred_element_type=jnp.float32) + sb2_ref[...]  # (TB, Kp) f32

    # log_softmax along dim=1. Padded class lanes carry bias -1e30 -> exp() == 0,
    # so the result on the real columns is numerically identical to the unpadded case.
    m = jnp.max(logits, axis=1, keepdims=True)
    s = logits - m
    lse = jnp.log(jnp.sum(jnp.exp(s), axis=1, keepdims=True))
    out_ref[...] = (s - lse).astype(out_ref.dtype)


def full_vertical_forward(x, params, *, num_clients, fpc, num_classes, tile_b=256):
    cw1, cb1, cw2, cb2, sw1, sb1, sw2, sb2 = params
    B = x.shape[0]
    C = num_clients

    # --- lane-dense output: pad the class dim up to a multiple of 128 ----------------
    k_pad = _round_up(num_classes, 128)
    sw2_p = jnp.zeros((HIDDEN, k_pad), jnp.float32).at[:, :num_classes].set(sw2)
    sb2_p = jnp.full((1, k_pad), -1e30, jnp.float32).at[:, :num_classes].set(sb2)

    # --- batch tiling -----------------------------------------------------------------
    tb = _round_up(min(tile_b, B), 8)          # sublane-aligned batch tile
    b_pad = _round_up(B, tb)
    grid = (b_pad // tb,)

    # --- per-client layout: (C, B, fpc) so the kernel indexes the leading axis --------
    x3d = x.reshape(B, C, fpc).transpose(1, 0, 2)                  # (C, B, fpc)
    if b_pad != B:
        x3d = jnp.pad(x3d, ((0, 0), (0, b_pad - B), (0, 0)))

    # --- bf16 matmul operands (accumulation / bias / activations stay f32) ------------
    bf = jnp.bfloat16
    x3d = x3d.astype(bf)
    cw1_b, cw2_b, sw1_b, sw2_b = (a.astype(bf) for a in (cw1, cw2, sw1, sw2_p))

    operands = (x3d, cw1_b, cb1, cw2_b, cb2, sw1_b, sb1, sw2_b, sb2_p)

    # Weights/biases: full-array VMEM-resident blocks (constant index map).
    # x / out: batch-tiled -> BlockSpec double-buffering pipelines the HBM traffic.
    def const_spec(a):
        return pl.BlockSpec(a.shape, lambda i, _nd=a.ndim: (0,) * _nd)

    in_specs = [pl.BlockSpec((C, tb, fpc), lambda i: (0, i, 0))] + \
               [const_spec(a) for a in operands[1:]]
    out_spec = pl.BlockSpec((tb, k_pad), lambda i: (i, 0))

    flops = 2 * b_pad * (C * (fpc * HIDDEN + HIDDEN * LATENT + LATENT * HIDDEN)
                         + HIDDEN * k_pad)
    bytes_accessed = sum(int(a.size) * a.dtype.itemsize for a in operands) \
        + b_pad * k_pad * 4
    cost = pl.CostEstimate(flops=flops,
                           transcendentals=b_pad * k_pad,
                           bytes_accessed=bytes_accessed)

    kernel = functools.partial(fused_vertical_kernel, num_clients)
    out_padded = pl.pallas_call(
        kernel,
        out_shape=jax.ShapeDtypeStruct((b_pad, k_pad), jnp.float32),
        grid=grid,
        in_specs=in_specs,
        out_specs=out_spec,
        compiler_params=pltpu.CompilerParams(
            dimension_semantics=("parallel",),        # megacore-shard batch on v7x
            vmem_limit_bytes=32 * 1024 * 1024,
        ),
        cost_estimate=cost,
    )(*operands)
    return out_padded[:B, :num_classes]


def init_params(key, num_clients, fpc, num_classes):
    """Deterministic PyTorch-Linear-style init (uniform +-1/sqrt(fan_in)).
    Weights stored as (in, out) so the kernel computes x @ W directly."""
    def linear(k, fan_in, fan_out):
        k1, k2 = jax.random.split(k)
        bound = 1.0 / jnp.sqrt(float(fan_in))
        w = jax.random.uniform(k1, (fan_in, fan_out), jnp.float32, -bound, bound)
        b = jax.random.uniform(k2, (1, fan_out), jnp.float32, -bound, bound)
        return w, b

    keys = jax.random.split(key, 2 * num_clients + 2)
    cw1, cb1, cw2, cb2 = [], [], [], []
    for c in range(num_clients):
        w1, b1 = linear(keys[2 * c], fpc, HIDDEN)
        w2, b2 = linear(keys[2 * c + 1], HIDDEN, LATENT)
        cw1.append(w1); cb1.append(b1); cw2.append(w2); cb2.append(b2)
    cw1 = jnp.stack(cw1)                        # (C, fpc, 100)
    cb1 = jnp.stack(cb1)                        # (C, 1, 100)
    cw2 = jnp.stack(cw2)                        # (C, 100, 20)
    cb2 = jnp.stack(cb2)                        # (C, 1, 20)

    sw1_flat, sb1 = linear(keys[-2], num_clients * LATENT, HIDDEN)
    sw2, sb2 = linear(keys[-1], HIDDEN, num_classes)
    sw1 = sw1_flat.reshape(num_clients, LATENT, HIDDEN)  # chunked server input weight
    return (cw1, cb1, cw2, cb2, sw1, sb1, sw2, sb2)


def reference_forward(x, params, *, num_clients, fpc):
    """Pure-JAX reference with PyTorch forward semantics and the kernel's precision
    policy (bf16 matmul operands, f32 accumulation/bias/activations)."""
    cw1, cb1, cw2, cb2, sw1, sb1, sw2, sb2 = params
    bf = jnp.bfloat16
    embs = []
    for c in range(num_clients):
        xc = x[:, c * fpc:(c + 1) * fpc].astype(bf)
        h = jnp.maximum(jnp.dot(xc, cw1[c].astype(bf),
                                preferred_element_type=jnp.float32) + cb1[c], 0.0)
        z = jnp.maximum(jnp.dot(h.astype(bf), cw2[c].astype(bf),
                                preferred_element_type=jnp.float32) + cb2[c], 0.0)
        embs.append(z)
    agg = jnp.concatenate(embs, axis=1).astype(bf)
    sw1_flat = sw1.reshape(num_clients * LATENT, HIDDEN).astype(bf)
    hs = jnp.maximum(jnp.dot(agg, sw1_flat,
                             preferred_element_type=jnp.float32) + sb1, 0.0)
    logits = jnp.dot(hs.astype(bf), sw2.astype(bf),
                     preferred_element_type=jnp.float32) + sb2
    return jax.nn.log_softmax(logits, axis=1)


if __name__ == "__main__":
    B = 256                      # small, but enough to exercise the batch grid (2 tiles)
    NUM_CLIENTS = 3
    FPC = 8                      # features per client
    NUM_FEATURES = NUM_CLIENTS * FPC
    NUM_CLASSES = 6

    key = jax.random.PRNGKey(0)
    kx, kp = jax.random.split(key)
    x = jax.random.normal(kx, (B, NUM_FEATURES), jnp.float32)
    params = init_params(kp, NUM_CLIENTS, FPC, NUM_CLASSES)

    out = full_vertical_forward(x, params, num_clients=NUM_CLIENTS,
                                fpc=FPC, num_classes=NUM_CLASSES, tile_b=128)
    out = jax.block_until_ready(out)

    ref = reference_forward(x, params, num_clients=NUM_CLIENTS, fpc=FPC)
    assert out.shape == (B, NUM_CLASSES)
    assert jnp.allclose(out, ref, atol=1e-3, rtol=1e-3), "mismatch vs reference"

    print("KERNEL_OK")
</pallas_src>

<mosaic_0001>
module attributes {stable_mosaic.version = 11 : i64} {
  func.func @fused_vertical_kernel(%arg0: i32, %arg1: memref<3x128x8xbf16, #tpu.memory_space<vmem>>, %arg2: memref<3x8x100xbf16, #tpu.memory_space<vmem>>, %arg3: memref<3x1x100xf32, #tpu.memory_space<vmem>>, %arg4: memref<3x100x20xbf16, #tpu.memory_space<vmem>>, %arg5: memref<3x1x20xf32, #tpu.memory_space<vmem>>, %arg6: memref<3x20x100xbf16, #tpu.memory_space<vmem>>, %arg7: memref<1x100xf32, #tpu.memory_space<vmem>>, %arg8: memref<100x128xbf16, #tpu.memory_space<vmem>>, %arg9: memref<1x128xf32, #tpu.memory_space<vmem>>, %arg10: memref<128x128xf32, #tpu.memory_space<vmem>>) attributes {dimension_semantics = [#tpu.dimension_semantics<parallel>], iteration_bounds = array<i64: 2>, scalar_prefetch = 0 : i64, scratch_operands = 0 : i64, tpu.core_type = #tpu.core_type<tc>, window_params = [{transform_indices = @transform_0, window_bounds = array<i64: 3, 128, 8>}, {pipeline_mode = #tpu.pipeline_mode<synchronous>, transform_indices = @transform_1, window_bounds = array<i64: 3, 8, 100>}, {pipeline_mode = #tpu.pipeline_mode<synchronous>, transform_indices = @transform_2, window_bounds = array<i64: 3, 1, 100>}, {pipeline_mode = #tpu.pipeline_mode<synchronous>, transform_indices = @transform_3, window_bounds = array<i64: 3, 100, 20>}, {pipeline_mode = #tpu.pipeline_mode<synchronous>, transform_indices = @transform_4, window_bounds = array<i64: 3, 1, 20>}, {pipeline_mode = #tpu.pipeline_mode<synchronous>, transform_indices = @transform_5, window_bounds = array<i64: 3, 20, 100>}, {pipeline_mode = #tpu.pipeline_mode<synchronous>, transform_indices = @transform_6, window_bounds = array<i64: 1, 100>}, {pipeline_mode = #tpu.pipeline_mode<synchronous>, transform_indices = @transform_7, window_bounds = array<i64: 100, 128>}, {pipeline_mode = #tpu.pipeline_mode<synchronous>, transform_indices = @transform_8, window_bounds = array<i64: 1, 128>}, {transform_indices = @transform_9, window_bounds = array<i64: 128, 128>}]} {
    %c0 = arith.constant 0 : index
    %c0_0 = arith.constant 0 : index
    %0 = vector.load %arg7[%c0, %c0_0] : memref<1x100xf32, #tpu.memory_space<vmem>>, vector<1x100xf32>
    %1 = vector.shape_cast %0 : vector<1x100xf32> to vector<1x100xf32>
    %2 = vector.broadcast %1 : vector<1x100xf32> to vector<128x100xf32>
    %c0_1 = arith.constant 0 : index
    %c0_2 = arith.constant 0 : index
    %c0_3 = arith.constant 0 : index
    %3 = vector.load %arg1[%c0_1, %c0_2, %c0_3] : memref<3x128x8xbf16, #tpu.memory_space<vmem>>, vector<1x128x8xbf16>
    %4 = vector.shape_cast %3 : vector<1x128x8xbf16> to vector<128x8xbf16>
    %c0_4 = arith.constant 0 : index
    %c0_5 = arith.constant 0 : index
    %c0_6 = arith.constant 0 : index
    %5 = vector.load %arg2[%c0_4, %c0_5, %c0_6] : memref<3x8x100xbf16, #tpu.memory_space<vmem>>, vector<1x8x100xbf16>
    %6 = vector.shape_cast %5 : vector<1x8x100xbf16> to vector<8x100xbf16>
    %cst = arith.constant dense<0.000000e+00> : vector<128x100xf32>
    %7 = tpu.matmul %4, %6, %cst {dimension_numbers = #tpu.dot_dimension_numbers<[1], [0], [0], [1], [0, 0, 1, 1], [], []>} : vector<128x8xbf16>, vector<8x100xbf16>, vector<128x100xf32> -> vector<128x100xf32>
    %c0_7 = arith.constant 0 : index
    %c0_8 = arith.constant 0 : index
    %c0_9 = arith.constant 0 : index
    %8 = vector.load %arg3[%c0_7, %c0_8, %c0_9] : memref<3x1x100xf32, #tpu.memory_space<vmem>>, vector<1x1x100xf32>
    %9 = vector.shape_cast %8 : vector<1x1x100xf32> to vector<1x100xf32>
    %10 = vector.broadcast %9 : vector<1x100xf32> to vector<128x100xf32>
    %11 = arith.addf %7, %10 : vector<128x100xf32>
    %cst_10 = arith.constant 0.000000e+00 : f32
    %12 = vector.broadcast %cst_10 : f32 to vector<128x100xf32>
    %13 = arith.maximumf %11, %12 : vector<128x100xf32>
    %14 = arith.truncf %13 : vector<128x100xf32> to vector<128x100xbf16>
    %c0_11 = arith.constant 0 : index
    %c0_12 = arith.constant 0 : index
    %c0_13 = arith.constant 0 : index
    %15 = vector.load %arg4[%c0_11, %c0_12, %c0_13] : memref<3x100x20xbf16, #tpu.memory_space<vmem>>, vector<1x100x20xbf16>
    %16 = vector.shape_cast %15 : vector<1x100x20xbf16> to vector<100x20xbf16>
    %cst_14 = arith.constant dense<0.000000e+00> : vector<128x20xf32>
    %17 = tpu.matmul %14, %16, %cst_14 {dimension_numbers = #tpu.dot_dimension_numbers<[1], [0], [0], [1], [0, 0, 1, 1], [], []>} : vector<128x100xbf16>, vector<100x20xbf16>, vector<128x20xf32> -> vector<128x20xf32>
    %c0_15 = arith.constant 0 : index
    %c0_16 = arith.constant 0 : index
    %c0_17 = arith.constant 0 : index
    %18 = vector.load %arg5[%c0_15, %c0_16, %c0_17] : memref<3x1x20xf32, #tpu.memory_space<vmem>>, vector<1x1x20xf32>
    %19 = vector.shape_cast %18 : vector<1x1x20xf32> to vector<1x20xf32>
    %20 = vector.broadcast %19 : vector<1x20xf32> to vector<128x20xf32>
    %21 = arith.addf %17, %20 : vector<128x20xf32>
    %cst_18 = arith.constant 0.000000e+00 : f32
    %22 = vector.broadcast %cst_18 : f32 to vector<128x20xf32>
    %23 = arith.maximumf %21, %22 : vector<128x20xf32>
    %24 = arith.truncf %23 : vector<128x20xf32> to vector<128x20xbf16>
    %c0_19 = arith.constant 0 : index
    %c0_20 = arith.constant 0 : index
    %c0_21 = arith.constant 0 : index
    %25 = vector.load %arg6[%c0_19, %c0_20, %c0_21] : memref<3x20x100xbf16, #tpu.memory_space<vmem>>, vector<1x20x100xbf16>
    %26 = vector.shape_cast %25 : vector<1x20x100xbf16> to vector<20x100xbf16>
    %cst_22 = arith.constant dense<0.000000e+00> : vector<128x100xf32>
    %27 = tpu.matmul %24, %26, %cst_22 {dimension_numbers = #tpu.dot_dimension_numbers<[1], [0], [0], [1], [0, 0, 1, 1], [], []>} : vector<128x20xbf16>, vector<20x100xbf16>, vector<128x100xf32> -> vector<128x100xf32>
    %28 = arith.addf %2, %27 : vector<128x100xf32>
    %c1 = arith.constant 1 : index
    %c0_23 = arith.constant 0 : index
    %c0_24 = arith.constant 0 : index
    %29 = vector.load %arg1[%c1, %c0_23, %c0_24] : memref<3x128x8xbf16, #tpu.memory_space<vmem>>, vector<1x128x8xbf16>
    %30 = vector.shape_cast %29 : vector<1x128x8xbf16> to vector<128x8xbf16>
    %c1_25 = arith.constant 1 : index
    %c0_26 = arith.constant 0 : index
    %c0_27 = arith.constant 0 : index
    %31 = vector.load %arg2[%c1_25, %c0_26, %c0_27] : memref<3x8x100xbf16, #tpu.memory_space<vmem>>, vector<1x8x100xbf16>
    %32 = vector.shape_cast %31 : vector<1x8x100xbf16> to vector<8x100xbf16>
    %cst_28 = arith.constant dense<0.000000e+00> : vector<128x100xf32>
    %33 = tpu.matmul %30, %32, %cst_28 {dimension_numbers = #tpu.dot_dimension_numbers<[1], [0], [0], [1], [0, 0, 1, 1], [], []>} : vector<128x8xbf16>, vector<8x100xbf16>, vector<128x100xf32> -> vector<128x100xf32>
    %c1_29 = arith.constant 1 : index
    %c0_30 = arith.constant 0 : index
    %c0_31 = arith.constant 0 : index
    %34 = vector.load %arg3[%c1_29, %c0_30, %c0_31] : memref<3x1x100xf32, #tpu.memory_space<vmem>>, vector<1x1x100xf32>
    %35 = vector.shape_cast %34 : vector<1x1x100xf32> to vector<1x100xf32>
    %36 = vector.broadcast %35 : vector<1x100xf32> to vector<128x100xf32>
    %37 = arith.addf %33, %36 : vector<128x100xf32>
    %cst_32 = arith.constant 0.000000e+00 : f32
    %38 = vector.broadcast %cst_32 : f32 to vector<128x100xf32>
    %39 = arith.maximumf %37, %38 : vector<128x100xf32>
    %40 = arith.truncf %39 : vector<128x100xf32> to vector<128x100xbf16>
    %c1_33 = arith.constant 1 : index
    %c0_34 = arith.constant 0 : index
    %c0_35 = arith.constant 0 : index
    %41 = vector.load %arg4[%c1_33, %c0_34, %c0_35] : memref<3x100x20xbf16, #tpu.memory_space<vmem>>, vector<1x100x20xbf16>
    %42 = vector.shape_cast %41 : vector<1x100x20xbf16> to vector<100x20xbf16>
    %cst_36 = arith.constant dense<0.000000e+00> : vector<128x20xf32>
    %43 = tpu.matmul %40, %42, %cst_36 {dimension_numbers = #tpu.dot_dimension_numbers<[1], [0], [0], [1], [0, 0, 1, 1], [], []>} : vector<128x100xbf16>, vector<100x20xbf16>, vector<128x20xf32> -> vector<128x20xf32>
    %c1_37 = arith.constant 1 : index
    %c0_38 = arith.constant 0 : index
    %c0_39 = arith.constant 0 : index
    %44 = vector.load %arg5[%c1_37, %c0_38, %c0_39] : memref<3x1x20xf32, #tpu.memory_space<vmem>>, vector<1x1x20xf32>
    %45 = vector.shape_cast %44 : vector<1x1x20xf32> to vector<1x20xf32>
    %46 = vector.broadcast %45 : vector<1x20xf32> to vector<128x20xf32>
    %47 = arith.addf %43, %46 : vector<128x20xf32>
    %cst_40 = arith.constant 0.000000e+00 : f32
    %48 = vector.broadcast %cst_40 : f32 to vector<128x20xf32>
    %49 = arith.maximumf %47, %48 : vector<128x20xf32>
    %50 = arith.truncf %49 : vector<128x20xf32> to vector<128x20xbf16>
    %c1_41 = arith.constant 1 : index
    %c0_42 = arith.constant 0 : index
    %c0_43 = arith.constant 0 : index
    %51 = vector.load %arg6[%c1_41, %c0_42, %c0_43] : memref<3x20x100xbf16, #tpu.memory_space<vmem>>, vector<1x20x100xbf16>
    %52 = vector.shape_cast %51 : vector<1x20x100xbf16> to vector<20x100xbf16>
    %cst_44 = arith.constant dense<0.000000e+00> : vector<128x100xf32>
    %53 = tpu.matmul %50, %52, %cst_44 {dimension_numbers = #tpu.dot_dimension_numbers<[1], [0], [0], [1], [0, 0, 1, 1], [], []>} : vector<128x20xbf16>, vector<20x100xbf16>, vector<128x100xf32> -> vector<128x100xf32>
    %54 = arith.addf %28, %53 : vector<128x100xf32>
    %c2 = arith.constant 2 : index
    %c0_45 = arith.constant 0 : index
    %c0_46 = arith.constant 0 : index
    %55 = vector.load %arg1[%c2, %c0_45, %c0_46] : memref<3x128x8xbf16, #tpu.memory_space<vmem>>, vector<1x128x8xbf16>
    %56 = vector.shape_cast %55 : vector<1x128x8xbf16> to vector<128x8xbf16>
    %c2_47 = arith.constant 2 : index
    %c0_48 = arith.constant 0 : index
    %c0_49 = arith.constant 0 : index
    %57 = vector.load %arg2[%c2_47, %c0_48, %c0_49] : memref<3x8x100xbf16, #tpu.memory_space<vmem>>, vector<1x8x100xbf16>
    %58 = vector.shape_cast %57 : vector<1x8x100xbf16> to vector<8x100xbf16>
    %cst_50 = arith.constant dense<0.000000e+00> : vector<128x100xf32>
    %59 = tpu.matmul %56, %58, %cst_50 {dimension_numbers = #tpu.dot_dimension_numbers<[1], [0], [0], [1], [0, 0, 1, 1], [], []>} : vector<128x8xbf16>, vector<8x100xbf16>, vector<128x100xf32> -> vector<128x100xf32>
    %c2_51 = arith.constant 2 : index
    %c0_52 = arith.constant 0 : index
    %c0_53 = arith.constant 0 : index
    %60 = vector.load %arg3[%c2_51, %c0_52, %c0_53] : memref<3x1x100xf32, #tpu.memory_space<vmem>>, vector<1x1x100xf32>
    %61 = vector.shape_cast %60 : vector<1x1x100xf32> to vector<1x100xf32>
    %62 = vector.broadcast %61 : vector<1x100xf32> to vector<128x100xf32>
    %63 = arith.addf %59, %62 : vector<128x100xf32>
    %cst_54 = arith.constant 0.000000e+00 : f32
    %64 = vector.broadcast %cst_54 : f32 to vector<128x100xf32>
    %65 = arith.maximumf %63, %64 : vector<128x100xf32>
    %66 = arith.truncf %65 : vector<128x100xf32> to vector<128x100xbf16>
    %c2_55 = arith.constant 2 : index
    %c0_56 = arith.constant 0 : index
    %c0_57 = arith.constant 0 : index
    %67 = vector.load %arg4[%c2_55, %c0_56, %c0_57] : memref<3x100x20xbf16, #tpu.memory_space<vmem>>, vector<1x100x20xbf16>
    %68 = vector.shape_cast %67 : vector<1x100x20xbf16> to vector<100x20xbf16>
    %cst_58 = arith.constant dense<0.000000e+00> : vector<128x20xf32>
    %69 = tpu.matmul %66, %68, %cst_58 {dimension_numbers = #tpu.dot_dimension_numbers<[1], [0], [0], [1], [0, 0, 1, 1], [], []>} : vector<128x100xbf16>, vector<100x20xbf16>, vector<128x20xf32> -> vector<128x20xf32>
    %c2_59 = arith.constant 2 : index
    %c0_60 = arith.constant 0 : index
    %c0_61 = arith.constant 0 : index
    %70 = vector.load %arg5[%c2_59, %c0_60, %c0_61] : memref<3x1x20xf32, #tpu.memory_space<vmem>>, vector<1x1x20xf32>
    %71 = vector.shape_cast %70 : vector<1x1x20xf32> to vector<1x20xf32>
    %72 = vector.broadcast %71 : vector<1x20xf32> to vector<128x20xf32>
    %73 = arith.addf %69, %72 : vector<128x20xf32>
    %cst_62 = arith.constant 0.000000e+00 : f32
    %74 = vector.broadcast %cst_62 : f32 to vector<128x20xf32>
    %75 = arith.maximumf %73, %74 : vector<128x20xf32>
    %76 = arith.truncf %75 : vector<128x20xf32> to vector<128x20xbf16>
    %c2_63 = arith.constant 2 : index
    %c0_64 = arith.constant 0 : index
    %c0_65 = arith.constant 0 : index
    %77 = vector.load %arg6[%c2_63, %c0_64, %c0_65] : memref<3x20x100xbf16, #tpu.memory_space<vmem>>, vector<1x20x100xbf16>
    %78 = vector.shape_cast %77 : vector<1x20x100xbf16> to vector<20x100xbf16>
    %cst_66 = arith.constant dense<0.000000e+00> : vector<128x100xf32>
    %79 = tpu.matmul %76, %78, %cst_66 {dimension_numbers = #tpu.dot_dimension_numbers<[1], [0], [0], [1], [0, 0, 1, 1], [], []>} : vector<128x20xbf16>, vector<20x100xbf16>, vector<128x100xf32> -> vector<128x100xf32>
    %80 = arith.addf %54, %79 : vector<128x100xf32>
    %cst_67 = arith.constant 0.000000e+00 : f32
    %81 = vector.broadcast %cst_67 : f32 to vector<128x100xf32>
    %82 = arith.maximumf %80, %81 : vector<128x100xf32>
    %83 = arith.truncf %82 : vector<128x100xf32> to vector<128x100xbf16>
    %c0_68 = arith.constant 0 : index
    %c0_69 = arith.constant 0 : index
    %84 = vector.load %arg8[%c0_68, %c0_69] : memref<100x128xbf16, #tpu.memory_space<vmem>>, vector<100x128xbf16>
    %cst_70 = arith.constant dense<0.000000e+00> : vector<128x128xf32>
    %85 = tpu.matmul %83, %84, %cst_70 {dimension_numbers = #tpu.dot_dimension_numbers<[1], [0], [0], [1], [0, 0, 1, 1], [], []>} : vector<128x100xbf16>, vector<100x128xbf16>, vector<128x128xf32> -> vector<128x128xf32>
    %c0_71 = arith.constant 0 : index
    %c0_72 = arith.constant 0 : index
    %86 = vector.load %arg9[%c0_71, %c0_72] : memref<1x128xf32, #tpu.memory_space<vmem>>, vector<1x128xf32>
    %87 = vector.broadcast %86 : vector<1x128xf32> to vector<128x128xf32>
    %88 = arith.addf %85, %87 : vector<128x128xf32>
    %cst_73 = arith.constant dense<0xFF800000> : vector<128xf32>
    %89 = vector.multi_reduction <maximumf>, %88, %cst_73 [1] : vector<128x128xf32> to vector<128xf32>
    %90 = vector.shape_cast %89 : vector<128xf32> to vector<128x1xf32>
    %91 = vector.broadcast %90 : vector<128x1xf32> to vector<128x128xf32>
    %92 = arith.subf %88, %91 : vector<128x128xf32>
    %93 = math.exp %92 : vector<128x128xf32>
    %cst_74 = arith.constant dense<0.000000e+00> : vector<128xf32>
    %94 = vector.multi_reduction <add>, %93, %cst_74 [1] : vector<128x128xf32> to vector<128xf32>
    %95 = vector.shape_cast %94 : vector<128xf32> to vector<128x1xf32>
    %96 = math.log %95 : vector<128x1xf32>
    %97 = vector.broadcast %96 : vector<128x1xf32> to vector<128x128xf32>
    %98 = arith.subf %92, %97 : vector<128x128xf32>
    %c0_75 = arith.constant 0 : index
    %c0_76 = arith.constant 0 : index
    %99 = vector.load %arg10[%c0_75, %c0_76] : memref<128x128xf32, #tpu.memory_space<vmem>>, vector<128x128xf32>
    tpu.vector_store %arg10[%c0_75, %c0_76], %98 {strides = array<i32>} : memref<128x128xf32, #tpu.memory_space<vmem>>, vector<128x128xf32>,
    return
  }
  func.func @transform_0(%arg0: i32) -> (i32, i32, i32) {
    %c0_i32 = arith.constant 0 : i32
    %c0_i32_0 = arith.constant 0 : i32
    %c0_i32_1 = arith.constant 0 : i32
    return %c0_i32, %arg0, %c0_i32_0 : i32, i32, i32
  }
  func.func @transform_1(%arg0: i32) -> (i32, i32, i32) {
    %c0_i32 = arith.constant 0 : i32
    %c0_i32_0 = arith.constant 0 : i32
    %c0_i32_1 = arith.constant 0 : i32
    %c0_i32_2 = arith.constant 0 : i32
    return %c0_i32, %c0_i32_0, %c0_i32_1 : i32, i32, i32
  }
  func.func @transform_2(%arg0: i32) -> (i32, i32, i32) {
    %c0_i32 = arith.constant 0 : i32
    %c0_i32_0 = arith.constant 0 : i32
    %c0_i32_1 = arith.constant 0 : i32
    %c0_i32_2 = arith.constant 0 : i32
    return %c0_i32, %c0_i32_0, %c0_i32_1 : i32, i32, i32
  }
  func.func @transform_3(%arg0: i32) -> (i32, i32, i32) {
    %c0_i32 = arith.constant 0 : i32
    %c0_i32_0 = arith.constant 0 : i32
    %c0_i32_1 = arith.constant 0 : i32
    %c0_i32_2 = arith.constant 0 : i32
    return %c0_i32, %c0_i32_0, %c0_i32_1 : i32, i32, i32
  }
  func.func @transform_4(%arg0: i32) -> (i32, i32, i32) {
    %c0_i32 = arith.constant 0 : i32
    %c0_i32_0 = arith.constant 0 : i32
    %c0_i32_1 = arith.constant 0 : i32
    %c0_i32_2 = arith.constant 0 : i32
    return %c0_i32, %c0_i32_0, %c0_i32_1 : i32, i32, i32
  }
  func.func @transform_5(%arg0: i32) -> (i32, i32, i32) {
    %c0_i32 = arith.constant 0 : i32
    %c0_i32_0 = arith.constant 0 : i32
    %c0_i32_1 = arith.constant 0 : i32
    %c0_i32_2 = arith.constant 0 : i32
    return %c0_i32, %c0_i32_0, %c0_i32_1 : i32, i32, i32
  }
  func.func @transform_6(%arg0: i32) -> (i32, i32) {
    %c0_i32 = arith.constant 0 : i32
    %c0_i32_0 = arith.constant 0 : i32
    %c0_i32_1 = arith.constant 0 : i32
    return %c0_i32, %c0_i32_0 : i32, i32
  }
  func.func @transform_7(%arg0: i32) -> (i32, i32) {
    %c0_i32 = arith.constant 0 : i32
    %c0_i32_0 = arith.constant 0 : i32
    %c0_i32_1 = arith.constant 0 : i32
    return %c0_i32, %c0_i32_0 : i32, i32
  }
  func.func @transform_8(%arg0: i32) -> (i32, i32) {
    %c0_i32 = arith.constant 0 : i32
    %c0_i32_0 = arith.constant 0 : i32
    %c0_i32_1 = arith.constant 0 : i32
    return %c0_i32, %c0_i32_0 : i32, i32
  }
  func.func @transform_9(%arg0: i32) -> (i32, i32) {
    %c0_i32 = arith.constant 0 : i32
    %c0_i32_0 = arith.constant 0 : i32
    return %arg0, %c0_i32 : i32, i32
  }
}

</mosaic_0001>

<llo_original>
// kernel: tpu_custom_call.1
$region0: #{tpu_custom_call.1}
  #allocation0 [shape = 'u32[]', space=smem, size = 0x4, offset = 0x4, fixed_abs, tag = 'smem constant byte address 0x4 - core index']
  #allocation1 [shape = 'u32[144,128]{1,0:T(1,128)}', space=vmem, size = 0x12000, scoped, tag = 'internal scratch']
  %s0 = inlined_call_operand.vmem [shape: bf16[3,256,8], index: 0, kind: input, shape index: {}]
  %s1 = inlined_call_operand.vmem [shape: bf16[3,8,100], index: 1, kind: input, shape index: {}]
  %s2 = inlined_call_operand.vmem [shape: f32[3,1,100], index: 2, kind: input, shape index: {}]
  %s3 = inlined_call_operand.vmem [shape: bf16[3,100,20], index: 3, kind: input, shape index: {}]
  %s4 = inlined_call_operand.vmem [shape: f32[3,1,20], index: 4, kind: input, shape index: {}]
  %s5 = inlined_call_operand.vmem [shape: bf16[3,20,100], index: 5, kind: input, shape index: {}]
  %s6 = inlined_call_operand.vmem [shape: f32[1,100], index: 6, kind: input, shape index: {}]
  %s7 = inlined_call_operand.vmem [shape: bf16[100,128], index: 7, kind: input, shape index: {}]
  %s8 = inlined_call_operand.vmem [shape: f32[1,128], index: 8, kind: input, shape index: {}]
  %s9 = inlined_call_operand.hbm [shape: f32[256,128], index: 9, kind: output, shape index: {}]
  %s10 = sld [smem:[#allocation0]]
  $region110: #{tpu_custom_call.1} parent=0
    _
  %s12 = ssub.s32 1, %s10
  %s13 = scalar_select 0, %s12, %s10
  $region1: #{tpu_custom_call.1} parent=0
    #allocation2 [shape = 'u8[196608]{0}', space=vmem, size = 0x30000, scoped, tag = 'input window, operand 0']
    #allocation3 [shape = 'u8[131072]{0}', space=vmem, size = 0x20000, scoped, tag = 'output window, operand 0']
    #allocation4 [shape = 's32[2]{0}', space=sflag, size = 0x8, scoped, tag = 'scoped memory for tpu_custom_call.1']
    %14 = vsyncpa [#allocation4], 0
    %s15 = scalar_lea.sflag [#allocation4], 1
    %16 = vsyncpa %s15, 0
    loop: start=0, step=1, limit=4
    $region2: #{tpu_custom_call.1} parent=1 // loop_pre_header
      _
    $region3: #{tpu_custom_call.1} parent=1 // loop_header
      %s18 = sphi 0, %s22
      %p19 = scmp.ge.s32.totalorder %s18, 4
      %s28 = sphi 0, %s30
      %s31 = sphi 0, %s28
      %s32 = sphi 0, %s31
      %s48 = sphi 0, %s32
      %s52 = sphi 0, %s52
      %s54 = sphi 0, %s52
      %s55 = sphi 0, %s54
      %s69 = sphi 0, %s55
      %s73 = sphi 0, %s73
      %s75 = sphi 0, %s73
      %s76 = sphi 0, %s75
      %s90 = sphi 0, %s76
      %s94 = sphi 0, %s94
      %s96 = sphi 0, %s94
      %s97 = sphi 0, %s96
      %s111 = sphi 0, %s97
      %s115 = sphi 0, %s115
      %s117 = sphi 0, %s115
      %s118 = sphi 0, %s117
      %s132 = sphi 0, %s118
      %s136 = sphi 0, %s136
      %s138 = sphi 0, %s136
      %s139 = sphi 0, %s138
      %s153 = sphi 0, %s139
      %s157 = sphi 0, %s157
      %s159 = sphi 0, %s157
      %s160 = sphi 0, %s159
      %s174 = sphi 0, %s160
      %s178 = sphi 0, %s178
      %s180 = sphi 0, %s178
      %s181 = sphi 0, %s180
      %s195 = sphi 0, %s181
      %s199 = sphi 0, %s199
      %s201 = sphi 0, %s199
      %s202 = sphi 0, %s201
      %s216 = sphi 0, %s202
      %s222 = sphi 0, %s224
      %s225 = sphi 0, %s222
      %s226 = sphi 0, %s225
      %s242 = sphi 0, %s226
    $region4: #{tpu_custom_call.1} parent=1 // loop_header_branch
      %21 = sbr.rel (%p19) target = $region8
    $region5: #{tpu_custom_call.1} parent=1 // loop_body
      %s23 = ssub.s32 %s18, 1
      %s24 = ssub.s32 %s18, 2
      %s25 = sadd.s32 %s18, 1
      %s26 = ssub.s32 %s18, %s25
      %p27 = scmp.eq.s32.totalorder %s26, 0
      %s29 = sadd.s32 %s28, 1
      %s30 = scalar_select %p27, %s28, %s29
      %p33 = pneg %p27
      %p34 = scmp.eq.s32.totalorder %s18, 1
      %p35 = por %p33, %p34
      %p36 = scmp.ne.s32.totalorder %s28, %s31
      %p37 = scmp.eq.s32.totalorder %s18, 0
      %p38 = por %p36, %p37
      %p39 = scmp.ne.s32.totalorder %s28, %s31
      %p40 = scmp.eq.s32.totalorder %s23, 1
      %p41 = por %p39, %p40
      %p42 = scmp.ne.s32.totalorder %s31, %s32
      %p43 = scmp.eq.s32.totalorder %s23, 0
      %p44 = por %p42, %p43
      %p45 = scmp.ne.s32.totalorder %s31, %s32
      %p46 = scmp.eq.s32.totalorder %s24, 1
      %p47 = por %p45, %p46
      %p49 = scmp.ne.s32.totalorder %s32, %s48
      %p50 = scmp.eq.s32.totalorder %s24, 0
      %p51 = por %p49, %p50
      %s53 = sadd.s32 %s52, 1
      %p56 = scmp.eq.s32.totalorder %s18, 1
      %p57 = scmp.ne.s32.totalorder %s52, %s54
      %p58 = scmp.eq.s32.totalorder %s18, 0
      %p59 = por %p57, %p58
      %p60 = scmp.ne.s32.totalorder %s52, %s54
      %p61 = scmp.eq.s32.totalorder %s23, 1
      %p62 = por %p60, %p61
      %p63 = scmp.ne.s32.totalorder %s54, %s55
      %p64 = scmp.eq.s32.totalorder %s23, 0
      %p65 = por %p63, %p64
      %p66 = scmp.ne.s32.totalorder %s54, %s55
      %p67 = scmp.eq.s32.totalorder %s24, 1
      %p68 = por %p66, %p67
      %p70 = scmp.ne.s32.totalorder %s55, %s69
      %p71 = scmp.eq.s32.totalorder %s24, 0
      %p72 = por %p70, %p71
      %s74 = sadd.s32 %s73, 1
      %p77 = scmp.eq.s32.totalorder %s18, 1
      %p78 = scmp.ne.s32.totalorder %s73, %s75
      %p79 = scmp.eq.s32.totalorder %s18, 0
      %p80 = por %p78, %p79
      %p81 = scmp.ne.s32.totalorder %s73, %s75
      %p82 = scmp.eq.s32.totalorder %s23, 1
      %p83 = por %p81, %p82
      %p84 = scmp.ne.s32.totalorder %s75, %s76
      %p85 = scmp.eq.s32.totalorder %s23, 0
      %p86 = por %p84, %p85
      %p87 = scmp.ne.s32.totalorder %s75, %s76
      %p88 = scmp.eq.s32.totalorder %s24, 1
      %p89 = por %p87, %p88
      %p91 = scmp.ne.s32.totalorder %s76, %s90
      %p92 = scmp.eq.s32.totalorder %s24, 0
      %p93 = por %p91, %p92
      %s95 = sadd.s32 %s94, 1
      %p98 = scmp.eq.s32.totalorder %s18, 1
      %p99 = scmp.ne.s32.totalorder %s94, %s96
      %p100 = scmp.eq.s32.totalorder %s18, 0
      %p101 = por %p99, %p100
      %p102 = scmp.ne.s32.totalorder %s94, %s96
      %p103 = scmp.eq.s32.totalorder %s23, 1
      %p104 = por %p102, %p103
      %p105 = scmp.ne.s32.totalorder %s96, %s97
      %p106 = scmp.eq.s32.totalorder %s23, 0
      %p107 = por %p105, %p106
      %p108 = scmp.ne.s32.totalorder %s96, %s97
      %p109 = scmp.eq.s32.totalorder %s24, 1
      %p110 = por %p108, %p109
      %p112 = scmp.ne.s32.totalorder %s97, %s111
      %p113 = scmp.eq.s32.totalorder %s24, 0
      %p114 = por %p112, %p113
      %s116 = sadd.s32 %s115, 1
      %p119 = scmp.eq.s32.totalorder %s18, 1
      %p120 = scmp.ne.s32.totalorder %s115, %s117
      %p121 = scmp.eq.s32.totalorder %s18, 0
      %p122 = por %p120, %p121
      %p123 = scmp.ne.s32.totalorder %s115, %s117
      %p124 = scmp.eq.s32.totalorder %s23, 1
      %p125 = por %p123, %p124
      %p126 = scmp.ne.s32.totalorder %s117, %s118
      %p127 = scmp.eq.s32.totalorder %s23, 0
      %p128 = por %p126, %p127
      %p129 = scmp.ne.s32.totalorder %s117, %s118
      %p130 = scmp.eq.s32.totalorder %s24, 1
      %p131 = por %p129, %p130
      %p133 = scmp.ne.s32.totalorder %s118, %s132
      %p134 = scmp.eq.s32.totalorder %s24, 0
      %p135 = por %p133, %p134
      %s137 = sadd.s32 %s136, 1
      %p140 = scmp.eq.s32.totalorder %s18, 1
      %p141 = scmp.ne.s32.totalorder %s136, %s138
      %p142 = scmp.eq.s32.totalorder %s18, 0
      %p143 = por %p141, %p142
      %p144 = scmp.ne.s32.totalorder %s136, %s138
      %p145 = scmp.eq.s32.totalorder %s23, 1
      %p146 = por %p144, %p145
      %p147 = scmp.ne.s32.totalorder %s138, %s139
      %p148 = scmp.eq.s32.totalorder %s23, 0
      %p149 = por %p147, %p148
      %p150 = scmp.ne.s32.totalorder %s138, %s139
      %p151 = scmp.eq.s32.totalorder %s24, 1
      %p152 = por %p150, %p151
      %p154 = scmp.ne.s32.totalorder %s139, %s153
      %p155 = scmp.eq.s32.totalorder %s24, 0
      %p156 = por %p154, %p155
      %s158 = sadd.s32 %s157, 1
      %p161 = scmp.eq.s32.totalorder %s18, 1
      %p162 = scmp.ne.s32.totalorder %s157, %s159
      %p163 = scmp.eq.s32.totalorder %s18, 0
      %p164 = por %p162, %p163
      %p165 = scmp.ne.s32.totalorder %s157, %s159
      %p166 = scmp.eq.s32.totalorder %s23, 1
      %p167 = por %p165, %p166
      %p168 = scmp.ne.s32.totalorder %s159, %s160
      %p169 = scmp.eq.s32.totalorder %s23, 0
      %p170 = por %p168, %p169
      %p171 = scmp.ne.s32.totalorder %s159, %s160
      %p172 = scmp.eq.s32.totalorder %s24, 1
      %p173 = por %p171, %p172
      %p175 = scmp.ne.s32.totalorder %s160, %s174
      %p176 = scmp.eq.s32.totalorder %s24, 0
      %p177 = por %p175, %p176
      %s179 = sadd.s32 %s178, 1
      %p182 = scmp.eq.s32.totalorder %s18, 1
      %p183 = scmp.ne.s32.totalorder %s178, %s180
      %p184 = scmp.eq.s32.totalorder %s18, 0
      %p185 = por %p183, %p184
      %p186 = scmp.ne.s32.totalorder %s178, %s180
      %p187 = scmp.eq.s32.totalorder %s23, 1
      %p188 = por %p186, %p187
      %p189 = scmp.ne.s32.totalorder %s180, %s181
      %p190 = scmp.eq.s32.totalorder %s23, 0
      %p191 = por %p189, %p190
      %p192 = scmp.ne.s32.totalorder %s180, %s181
      %p193 = scmp.eq.s32.totalorder %s24, 1
      %p194 = por %p192, %p193
      %p196 = scmp.ne.s32.totalorder %s181, %s195
      %p197 = scmp.eq.s32.totalorder %s24, 0
      %p198 = por %p196, %p197
      %s200 = sadd.s32 %s199, 1
      %p203 = scmp.eq.s32.totalorder %s18, 1
      %p204 = scmp.ne.s32.totalorder %s199, %s201
      %p205 = scmp.eq.s32.totalorder %s18, 0
      %p206 = por %p204, %p205
      %p207 = scmp.ne.s32.totalorder %s199, %s201
      %p208 = scmp.eq.s32.totalorder %s23, 1
      %p209 = por %p207, %p208
      %p210 = scmp.ne.s32.totalorder %s201, %s202
      %p211 = scmp.eq.s32.totalorder %s23, 0
      %p212 = por %p210, %p211
      %p213 = scmp.ne.s32.totalorder %s201, %s202
      %p214 = scmp.eq.s32.totalorder %s24, 1
      %p215 = por %p213, %p214
      %p217 = scmp.ne.s32.totalorder %s202, %s216
      %p218 = scmp.eq.s32.totalorder %s24, 0
      %p219 = por %p217, %p218
      %s220 = ssub.s32 %s18, %s25
      %p221 = scmp.eq.s32.totalorder %s220, 0
      %s223 = sadd.s32 %s222, 1
      %s224 = scalar_select %p221, %s222, %s223
      %p227 = pneg %p221
      %p228 = scmp.eq.s32.totalorder %s18, 1
      %p229 = por %p227, %p228
      %p230 = scmp.ne.s32.totalorder %s222, %s225
      %p231 = scmp.eq.s32.totalorder %s18, 0
      %p232 = por %p230, %p231
      %p233 = scmp.ne.s32.totalorder %s222, %s225
      %p234 = scmp.eq.s32.totalorder %s23, 1
      %p235 = por %p233, %p234
      %p236 = scmp.ne.s32.totalorder %s225, %s226
      %p237 = scmp.eq.s32.totalorder %s23, 0
      %p238 = por %p236, %p237
      %p239 = scmp.ne.s32.totalorder %s225, %s226
      %p240 = scmp.eq.s32.totalorder %s24, 1
      %p241 = por %p239, %p240
      %p243 = scmp.ne.s32.totalorder %s226, %s242
      %p244 = scmp.eq.s32.totalorder %s24, 0
      %p245 = por %p243, %p244
      %p246 = scmp.le.s32.totalorder 1, %s18
      %p247 = scmp.lt.s32.totalorder %s18, 3
      %p248 = pnand %p246, %p247
      %p249 = pneg %p248
      // Predicated region
      $region9: #{tpu_custom_call.1} parent=5 // pred_check
        _
      $region10: #{tpu_custom_call.1} parent=5 // pred_check_branch
        %251 = sbr.rel (%p248) target = $region12
      $region11: #{tpu_custom_call.1} parent=5 // pred_region
        %s252 = ssub.s32 %s18, 1
        // Predicated region
        $region13: #{tpu_custom_call.1} parent=11 // pred_check
          %p253 = pneg %p65
        $region14: #{tpu_custom_call.1} parent=11 // pred_check_branch
          %255 = sbr.rel (%p253) target = $region16
        $region15: #{tpu_custom_call.1} parent=11 // pred_region
          _
        $region16: #{tpu_custom_call.1} parent=11 // pred_fallthru
          _
        // Predicated region
        $region17: #{tpu_custom_call.1} parent=11 // pred_check
          %p256 = pneg %p86
        $region18: #{tpu_custom_call.1} parent=11 // pred_check_branch
          %258 = sbr.rel (%p256) target = $region20
        $region19: #{tpu_custom_call.1} parent=11 // pred_region
          _
        $region20: #{tpu_custom_call.1} parent=11 // pred_fallthru
          _
        // Predicated region
        $region21: #{tpu_custom_call.1} parent=11 // pred_check
          %p259 = pneg %p107
        $region22: #{tpu_custom_call.1} parent=11 // pred_check_branch
          %261 = sbr.rel (%p259) target = $region24
        $region23: #{tpu_custom_call.1} parent=11 // pred_region
          _
        $region24: #{tpu_custom_call.1} parent=11 // pred_fallthru
          _
        // Predicated region
        $region25: #{tpu_custom_call.1} parent=11 // pred_check
          %p262 = pneg %p128
        $region26: #{tpu_custom_call.1} parent=11 // pred_check_branch
          %264 = sbr.rel (%p262) target = $region28
        $region27: #{tpu_custom_call.1} parent=11 // pred_region
          _
        $region28: #{tpu_custom_call.1} parent=11 // pred_fallthru
          _
        // Predicated region
        $region29: #{tpu_custom_call.1} parent=11 // pred_check
          %p265 = pneg %p149
        $region30: #{tpu_custom_call.1} parent=11 // pred_check_branch
          %267 = sbr.rel (%p265) target = $region32
        $region31: #{tpu_custom_call.1} parent=11 // pred_region
          _
        $region32: #{tpu_custom_call.1} parent=11 // pred_fallthru
          _
        // Predicated region
        $region33: #{tpu_custom_call.1} parent=11 // pred_check
          %p268 = pneg %p170
        $region34: #{tpu_custom_call.1} parent=11 // pred_check_branch
          %270 = sbr.rel (%p268) target = $region36
        $region35: #{tpu_custom_call.1} parent=11 // pred_region
          _
        $region36: #{tpu_custom_call.1} parent=11 // pred_fallthru
          _
        // Predicated region
        $region37: #{tpu_custom_call.1} parent=11 // pred_check
          %p271 = pneg %p191
        $region38: #{tpu_custom_call.1} parent=11 // pred_check_branch
          %273 = sbr.rel (%p271) target = $region40
        $region39: #{tpu_custom_call.1} parent=11 // pred_region
          _
        $region40: #{tpu_custom_call.1} parent=11 // pred_fallthru
          _
        // Predicated region
        $region41: #{tpu_custom_call.1} parent=11 // pred_check
          %p274 = pneg %p212
        $region42: #{tpu_custom_call.1} parent=11 // pred_check_branch
          %276 = sbr.rel (%p274) target = $region44
        $region43: #{tpu_custom_call.1} parent=11 // pred_region
          _
        $region44: #{tpu_custom_call.1} parent=11 // pred_fallthru
          _
      $region12: #{tpu_custom_call.1} parent=5 // pred_fallthru
        _
      %p277 = scmp.lt.s32.totalorder %s18, 2
      // Predicated region
      $region45: #{tpu_custom_call.1} parent=5 // pred_check
        %p278 = pneg %p277
      $region46: #{tpu_custom_call.1} parent=5 // pred_check_branch
        %280 = sbr.rel (%p278) target = $region48
      $region47: #{tpu_custom_call.1} parent=5 // pred_region
        // Predicated region
        $region49: #{tpu_custom_call.1} parent=47 // pred_check
          %p281 = pneg %p38
        $region50: #{tpu_custom_call.1} parent=47 // pred_check_branch
          %283 = sbr.rel (%p281) target = $region52
        $region51: #{tpu_custom_call.1} parent=47 // pred_region
          %s284 = sand.u32 %s28, 1
          %s285 = sand.u32 %s28, 1
          %s286 = smul.addr %s285, 192
          %s287 = scalar_lea.vmem [#allocation2], %s286
          %s288 = smul.u32 16, %s18
          %s289 = smul.addr %s288, 4
          %s290 = scalar_lea.vmem %s0, %s289
          // Predicated region
          $region53: #{tpu_custom_call.1} parent=51 // pred_check
            _
          $region54: #{tpu_custom_call.1} parent=51 // pred_check_branch
            %292 = sbr.rel (0) target = $region56
          $region55: #{tpu_custom_call.1} parent=51 // pred_region
            // Predicated region
            $region57: #{tpu_custom_call.1} parent=55 // pred_check
              _
            $region58: #{tpu_custom_call.1} parent=55 // pred_check_branch
              %294 = sbr.rel target = $region60
            $region59: #{tpu_custom_call.1} parent=55 // pred_region
              // Predicated region
              $region72: #{tpu_custom_call.1} parent=59 // pred_check
                _
              $region73: #{tpu_custom_call.1} parent=59 // pred_check_branch
                %403 = sbr.rel (0) target = $region75
              $region74: #{tpu_custom_call.1} parent=59 // pred_region
                loop: start=0, step=1, limit=1
                $region76: #{tpu_custom_call.1} parent=74 // loop_pre_header
                  _
                $region77: #{tpu_custom_call.1} parent=74 // loop_header
                  %s405 = sphi 0, %s409
                  %p406 = scmp.ge.s32.totalorder %s405, 1
                  %s410 = sphi %s290, %s290
                  %s411 = sphi %s287, %s287
                $region78: #{tpu_custom_call.1} parent=74 // loop_header_branch
                  %408 = sbr.rel (%p406) target = $region82
                $region79: #{tpu_custom_call.1} parent=74 // loop_body
                  _
                $region80: #{tpu_custom_call.1} parent=74 // loop_footer
                  %s409 = sadd.s32 1, %s405
                $region81: #{tpu_custom_call.1} parent=74 // loop_footer_branch
                  %404 = sbr.rel target = $region77
                $region82: #{tpu_custom_call.1} parent=74 // loop_exit
                  _
                loop: start=0, step=1, limit=1
                $region83: #{tpu_custom_call.1} parent=74 // loop_pre_header
                  _
                $region84: #{tpu_custom_call.1} parent=74 // loop_header
                  %s414 = sphi 0, %s418
                  %p415 = scmp.ge.s32.totalorder %s414, 1
                  %s419 = sphi %s290, %s290
                  %s420 = sphi %s287, %s287
                $region85: #{tpu_custom_call.1} parent=74 // loop_header_branch
                  %417 = sbr.rel (%p415) target = $region89
                $region86: #{tpu_custom_call.1} parent=74 // loop_body
                  %v421 = vld [vmem:[%s419] sm:$0xf]
                  %422 = vst [vmem:[%s420] sm:$0xf] %v421
                  %v423 = vld [vmem:[%s419 + $0x4] sm:$0xf]
                  %424 = vst [vmem:[%s420 + $0x4] sm:$0xf] %v423
                  %v425 = vld [vmem:[%s419 + $0x8] sm:$0xf]
                  %426 = vst [vmem:[%s420 + $0x8] sm:$0xf] %v425
                  %v427 = vld [vmem:[%s419 + $0xc] sm:$0xf]
                  %428 = vst [vmem:[%s420 + $0xc] sm:$0xf] %v427
                  %v429 = vld [vmem:[%s419 + $0x10] sm:$0xf]
                  %430 = vst [vmem:[%s420 + $0x10] sm:$0xf] %v429
                  %v431 = vld [vmem:[%s419 + $0x14] sm:$0xf]
                  %432 = vst [vmem:[%s420 + $0x14] sm:$0xf] %v431
                  %v433 = vld [vmem:[%s419 + $0x18] sm:$0xf]
                  %434 = vst [vmem:[%s420 + $0x18] sm:$0xf] %v433
                  %v435 = vld [vmem:[%s419 + $0x1c] sm:$0xf]
                  %436 = vst [vmem:[%s420 + $0x1c] sm:$0xf] %v435
                  %v437 = vld [vmem:[%s419 + $0x20] sm:$0xf]
                  %438 = vst [vmem:[%s420 + $0x20] sm:$0xf] %v437
                  %v439 = vld [vmem:[%s419 + $0x24] sm:$0xf]
                  %440 = vst [vmem:[%s420 + $0x24] sm:$0xf] %v439
                  %v441 = vld [vmem:[%s419 + $0x28] sm:$0xf]
                  %442 = vst [vmem:[%s420 + $0x28] sm:$0xf] %v441
                  %v443 = vld [vmem:[%s419 + $0x2c] sm:$0xf]
                  %444 = vst [vmem:[%s420 + $0x2c] sm:$0xf] %v443
                  %v445 = vld [vmem:[%s419 + $0x30] sm:$0xf]
                  %446 = vst [vmem:[%s420 + $0x30] sm:$0xf] %v445
                  %v447 = vld [vmem:[%s419 + $0x34] sm:$0xf]
                  %448 = vst [vmem:[%s420 + $0x34] sm:$0xf] %v447
                  %v449 = vld [vmem:[%s419 + $0x38] sm:$0xf]
                  %450 = vst [vmem:[%s420 + $0x38] sm:$0xf] %v449
                  %v451 = vld [vmem:[%s419 + $0x3c] sm:$0xf]
                  %452 = vst [vmem:[%s420 + $0x3c] sm:$0xf] %v451
                  %v453 = vld [vmem:[%s419 + $0x80] sm:$0xf]
                  %454 = vst [vmem:[%s420 + $0x40] sm:$0xf] %v453
                  %v455 = vld [vmem:[%s419 + $0x84] sm:$0xf]
                  %456 = vst [vmem:[%s420 + $0x44] sm:$0xf] %v455
                  %v457 = vld [vmem:[%s419 + $0x88] sm:$0xf]
                  %458 = vst [vmem:[%s420 + $0x48] sm:$0xf] %v457
                  %v459 = vld [vmem:[%s419 + $0x8c] sm:$0xf]
                  %460 = vst [vmem:[%s420 + $0x4c] sm:$0xf] %v459
                  %v461 = vld [vmem:[%s419 + $0x90] sm:$0xf]
                  %462 = vst [vmem:[%s420 + $0x50] sm:$0xf] %v461
                  %v463 = vld [vmem:[%s419 + $0x94] sm:$0xf]
                  %464 = vst [vmem:[%s420 + $0x54] sm:$0xf] %v463
                  %v465 = vld [vmem:[%s419 + $0x98] sm:$0xf]
                  %466 = vst [vmem:[%s420 + $0x58] sm:$0xf] %v465
                  %v467 = vld [vmem:[%s419 + $0x9c] sm:$0xf]
                  %468 = vst [vmem:[%s420 + $0x5c] sm:$0xf] %v467
                  %v469 = vld [vmem:[%s419 + $0xa0] sm:$0xf]
                  %470 = vst [vmem:[%s420 + $0x60] sm:$0xf] %v469
                  %v471 = vld [vmem:[%s419 + $0xa4] sm:$0xf]
                  %472 = vst [vmem:[%s420 + $0x64] sm:$0xf] %v471
                  %v473 = vld [vmem:[%s419 + $0xa8] sm:$0xf]
                  %474 = vst [vmem:[%s420 + $0x68] sm:$0xf] %v473
                  %v475 = vld [vmem:[%s419 + $0xac] sm:$0xf]
                  %476 = vst [vmem:[%s420 + $0x6c] sm:$0xf] %v475
                  %v477 = vld [vmem:[%s419 + $0xb0] sm:$0xf]
                  %478 = vst [vmem:[%s420 + $0x70] sm:$0xf] %v477
                  %v479 = vld [vmem:[%s419 + $0xb4] sm:$0xf]
                  %480 = vst [vmem:[%s420 + $0x74] sm:$0xf] %v479
                  %v481 = vld [vmem:[%s419 + $0xb8] sm:$0xf]
                  %482 = vst [vmem:[%s420 + $0x78] sm:$0xf] %v481
                  %v483 = vld [vmem:[%s419 + $0xbc] sm:$0xf]
                  %484 = vst [vmem:[%s420 + $0x7c] sm:$0xf] %v483
                  %v485 = vld [vmem:[%s419 + $0x100] sm:$0xf]
                  %486 = vst [vmem:[%s420 + $0x80] sm:$0xf] %v485
                  %v487 = vld [vmem:[%s419 + $0x104] sm:$0xf]
                  %488 = vst [vmem:[%s420 + $0x84] sm:$0xf] %v487
                  %v489 = vld [vmem:[%s419 + $0x108] sm:$0xf]
                  %490 = vst [vmem:[%s420 + $0x88] sm:$0xf] %v489
                  %v491 = vld [vmem:[%s419 + $0x10c] sm:$0xf]
                  %492 = vst [vmem:[%s420 + $0x8c] sm:$0xf] %v491
                  %v493 = vld [vmem:[%s419 + $0x110] sm:$0xf]
                  %494 = vst [vmem:[%s420 + $0x90] sm:$0xf] %v493
                  %v495 = vld [vmem:[%s419 + $0x114] sm:$0xf]
                  %496 = vst [vmem:[%s420 + $0x94] sm:$0xf] %v495
                  %v497 = vld [vmem:[%s419 + $0x118] sm:$0xf]
                  %498 = vst [vmem:[%s420 + $0x98] sm:$0xf] %v497
                  %v499 = vld [vmem:[%s419 + $0x11c] sm:$0xf]
                  %500 = vst [vmem:[%s420 + $0x9c] sm:$0xf] %v499
                  %v501 = vld [vmem:[%s419 + $0x120] sm:$0xf]
                  %502 = vst [vmem:[%s420 + $0xa0] sm:$0xf] %v501
                  %v503 = vld [vmem:[%s419 + $0x124] sm:$0xf]
                  %504 = vst [vmem:[%s420 + $0xa4] sm:$0xf] %v503
                  %v505 = vld [vmem:[%s419 + $0x128] sm:$0xf]
                  %506 = vst [vmem:[%s420 + $0xa8] sm:$0xf] %v505
                  %v507 = vld [vmem:[%s419 + $0x12c] sm:$0xf]
                  %508 = vst [vmem:[%s420 + $0xac] sm:$0xf] %v507
                  %v509 = vld [vmem:[%s419 + $0x130] sm:$0xf]
                  %510 = vst [vmem:[%s420 + $0xb0] sm:$0xf] %v509
                  %v511 = vld [vmem:[%s419 + $0x134] sm:$0xf]
                  %512 = vst [vmem:[%s420 + $0xb4] sm:$0xf] %v511
                  %v513 = vld [vmem:[%s419 + $0x138] sm:$0xf]
                  %514 = vst [vmem:[%s420 + $0xb8] sm:$0xf] %v513
                  %v515 = vld [vmem:[%s419 + $0x13c] sm:$0xf]
                  %516 = vst [vmem:[%s420 + $0xbc] sm:$0xf] %v515
                $region87: #{tpu_custom_call.1} parent=74 // loop_footer
                  %s418 = sadd.s32 1, %s414
                $region88: #{tpu_custom_call.1} parent=74 // loop_footer_branch
                  %413 = sbr.rel target = $region84
                $region89: #{tpu_custom_call.1} parent=74 // loop_exit
                  _
              $region75: #{tpu_custom_call.1} parent=59 // pred_fallthru
                _
            $region60: #{tpu_custom_call.1} parent=55 // pred_fallthru
              _
            // Predicated region
            $region61: #{tpu_custom_call.1} parent=55 // pred_check
              _
            $region62: #{tpu_custom_call.1} parent=55 // pred_check_branch
              %296 = sbr.rel (0) target = $region64
            $region63: #{tpu_custom_call.1} parent=55 // pred_region
              loop: start=0, step=1, limit=1
              $region65: #{tpu_custom_call.1} parent=63 // loop_pre_header
                _
              $region66: #{tpu_custom_call.1} parent=63 // loop_header
                %s299 = sphi 0, %s303
                %p300 = scmp.ge.s32.totalorder %s299, 1
                %s304 = sphi %s290, %s290
                %s305 = sphi %s287, %s287
              $region67: #{tpu_custom_call.1} parent=63 // loop_header_branch
                %302 = sbr.rel (%p300) target = $region71
              $region68: #{tpu_custom_call.1} parent=63 // loop_body
                %v306 = vld [vmem:[%s304] sm:$0xf]
                %307 = vst [vmem:[%s305] sm:$0xf] %v306
                %v308 = vld [vmem:[%s304 + $0x4] sm:$0xf]
                %309 = vst [vmem:[%s305 + $0x4] sm:$0xf] %v308
                %v310 = vld [vmem:[%s304 + $0x8] sm:$0xf]
                %311 = vst [vmem:[%s305 + $0x8] sm:$0xf] %v310
                %v312 = vld [vmem:[%s304 + $0xc] sm:$0xf]
                %313 = vst [vmem:[%s305 + $0xc] sm:$0xf] %v312
                %v314 = vld [vmem:[%s304 + $0x10] sm:$0xf]
                %315 = vst [vmem:[%s305 + $0x10] sm:$0xf] %v314
                %v316 = vld [vmem:[%s304 + $0x14] sm:$0xf]
                %317 = vst [vmem:[%s305 + $0x14] sm:$0xf] %v316
                %v318 = vld [vmem:[%s304 + $0x18] sm:$0xf]
                %319 = vst [vmem:[%s305 + $0x18] sm:$0xf] %v318
                %v320 = vld [vmem:[%s304 + $0x1c] sm:$0xf]
                %321 = vst [vmem:[%s305 + $0x1c] sm:$0xf] %v320
                %v322 = vld [vmem:[%s304 + $0x20] sm:$0xf]
                %323 = vst [vmem:[%s305 + $0x20] sm:$0xf] %v322
                %v324 = vld [vmem:[%s304 + $0x24] sm:$0xf]
                %325 = vst [vmem:[%s305 + $0x24] sm:$0xf] %v324
                %v326 = vld [vmem:[%s304 + $0x28] sm:$0xf]
                %327 = vst [vmem:[%s305 + $0x28] sm:$0xf] %v326
                %v328 = vld [vmem:[%s304 + $0x2c] sm:$0xf]
                %329 = vst [vmem:[%s305 + $0x2c] sm:$0xf] %v328
                %v330 = vld [vmem:[%s304 + $0x30] sm:$0xf]
                %331 = vst [vmem:[%s305 + $0x30] sm:$0xf] %v330
                %v332 = vld [vmem:[%s304 + $0x34] sm:$0xf]
                %333 = vst [vmem:[%s305 + $0x34] sm:$0xf] %v332
                %v334 = vld [vmem:[%s304 + $0x38] sm:$0xf]
                %335 = vst [vmem:[%s305 + $0x38] sm:$0xf] %v334
                %v336 = vld [vmem:[%s304 + $0x3c] sm:$0xf]
                %337 = vst [vmem:[%s305 + $0x3c] sm:$0xf] %v336
                %v338 = vld [vmem:[%s304 + $0x80] sm:$0xf]
                %339 = vst [vmem:[%s305 + $0x40] sm:$0xf] %v338
                %v340 = vld [vmem:[%s304 + $0x84] sm:$0xf]
                %341 = vst [vmem:[%s305 + $0x44] sm:$0xf] %v340
                %v342 = vld [vmem:[%s304 + $0x88] sm:$0xf]
                %343 = vst [vmem:[%s305 + $0x48] sm:$0xf] %v342
                %v344 = vld [vmem:[%s304 + $0x8c] sm:$0xf]
                %345 = vst [vmem:[%s305 + $0x4c] sm:$0xf] %v344
                %v346 = vld [vmem:[%s304 + $0x90] sm:$0xf]
                %347 = vst [vmem:[%s305 + $0x50] sm:$0xf] %v346
                %v348 = vld [vmem:[%s304 + $0x94] sm:$0xf]
                %349 = vst [vmem:[%s305 + $0x54] sm:$0xf] %v348
                %v350 = vld [vmem:[%s304 + $0x98] sm:$0xf]
                %351 = vst [vmem:[%s305 + $0x58] sm:$0xf] %v350
                %v352 = vld [vmem:[%s304 + $0x9c] sm:$0xf]
                %353 = vst [vmem:[%s305 + $0x5c] sm:$0xf] %v352
                %v354 = vld [vmem:[%s304 + $0xa0] sm:$0xf]
                %355 = vst [vmem:[%s305 + $0x60] sm:$0xf] %v354
                %v356 = vld [vmem:[%s304 + $0xa4] sm:$0xf]
                %357 = vst [vmem:[%s305 + $0x64] sm:$0xf] %v356
                %v358 = vld [vmem:[%s304 + $0xa8] sm:$0xf]
                %359 = vst [vmem:[%s305 + $0x68] sm:$0xf] %v358
                %v360 = vld [vmem:[%s304 + $0xac] sm:$0xf]
                %361 = vst [vmem:[%s305 + $0x6c] sm:$0xf] %v360
                %v362 = vld [vmem:[%s304 + $0xb0] sm:$0xf]
                %363 = vst [vmem:[%s305 + $0x70] sm:$0xf] %v362
                %v364 = vld [vmem:[%s304 + $0xb4] sm:$0xf]
                %365 = vst [vmem:[%s305 + $0x74] sm:$0xf] %v364
                %v366 = vld [vmem:[%s304 + $0xb8] sm:$0xf]
                %367 = vst [vmem:[%s305 + $0x78] sm:$0xf] %v366
                %v368 = vld [vmem:[%s304 + $0xbc] sm:$0xf]
                %369 = vst [vmem:[%s305 + $0x7c] sm:$0xf] %v368
                %v370 = vld [vmem:[%s304 + $0x100] sm:$0xf]
                %371 = vst [vmem:[%s305 + $0x80] sm:$0xf] %v370
                %v372 = vld [vmem:[%s304 + $0x104] sm:$0xf]
                %373 = vst [vmem:[%s305 + $0x84] sm:$0xf] %v372
                %v374 = vld [vmem:[%s304 + $0x108] sm:$0xf]
                %375 = vst [vmem:[%s305 + $0x88] sm:$0xf] %v374
                %v376 = vld [vmem:[%s304 + $0x10c] sm:$0xf]
                %377 = vst [vmem:[%s305 + $0x8c] sm:$0xf] %v376
                %v378 = vld [vmem:[%s304 + $0x110] sm:$0xf]
                %379 = vst [vmem:[%s305 + $0x90] sm:$0xf] %v378
                %v380 = vld [vmem:[%s304 + $0x114] sm:$0xf]
                %381 = vst [vmem:[%s305 + $0x94] sm:$0xf] %v380
                %v382 = vld [vmem:[%s304 + $0x118] sm:$0xf]
                %383 = vst [vmem:[%s305 + $0x98] sm:$0xf] %v382
                %v384 = vld [vmem:[%s304 + $0x11c] sm:$0xf]
                %385 = vst [vmem:[%s305 + $0x9c] sm:$0xf] %v384
                %v386 = vld [vmem:[%s304 + $0x120] sm:$0xf]
                %387 = vst [vmem:[%s305 + $0xa0] sm:$0xf] %v386
                %v388 = vld [vmem:[%s304 + $0x124] sm:$0xf]
                %389 = vst [vmem:[%s305 + $0xa4] sm:$0xf] %v388
                %v390 = vld [vmem:[%s304 + $0x128] sm:$0xf]
                %391 = vst [vmem:[%s305 + $0xa8] sm:$0xf] %v390
                %v392 = vld [vmem:[%s304 + $0x12c] sm:$0xf]
                %393 = vst [vmem:[%s305 + $0xac] sm:$0xf] %v392
                %v394 = vld [vmem:[%s304 + $0x130] sm:$0xf]
                %395 = vst [vmem:[%s305 + $0xb0] sm:$0xf] %v394
                %v396 = vld [vmem:[%s304 + $0x134] sm:$0xf]
                %397 = vst [vmem:[%s305 + $0xb4] sm:$0xf] %v396
                %v398 = vld [vmem:[%s304 + $0x138] sm:$0xf]
                %399 = vst [vmem:[%s305 + $0xb8] sm:$0xf] %v398
                %v400 = vld [vmem:[%s304 + $0x13c] sm:$0xf]
                %401 = vst [vmem:[%s305 + $0xbc] sm:$0xf] %v400
              $region69: #{tpu_custom_call.1} parent=63 // loop_footer
                %s303 = sadd.s32 1, %s299
              $region70: #{tpu_custom_call.1} parent=63 // loop_footer_branch
                %298 = sbr.rel target = $region66
              $region71: #{tpu_custom_call.1} parent=63 // loop_exit
                _
            $region64: #{tpu_custom_call.1} parent=55 // pred_fallthru
              _
          $region56: #{tpu_custom_call.1} parent=51 // pred_fallthru
            _
          %517 = vnop
        $region52: #{tpu_custom_call.1} parent=47 // pred_fallthru
          _
      $region48: #{tpu_custom_call.1} parent=5 // pred_fallthru
        _
      %p518 = scmp.le.s32.totalorder 1, %s18
      %p519 = scmp.lt.s32.totalorder %s18, 3
      %p520 = pnand %p518, %p519
      %p521 = pneg %p520
      // Predicated region
      $region90: #{tpu_custom_call.1} parent=5 // pred_check
        _
      $region91: #{tpu_custom_call.1} parent=5 // pred_check_branch
        %523 = sbr.rel (%p520) target = $region93
      $region92: #{tpu_custom_call.1} parent=5 // pred_region
        %s524 = ssub.s32 %s18, 1
        %s525 = sand.u32 %s31, 1
        %s526 = sand.u32 %s31, 1
        %s527 = smul.addr %s526, 192
        %s528 = scalar_lea.vmem [#allocation2], %s527
        // Predicated region
        $region94: #{tpu_custom_call.1} parent=92 // pred_check
          %p529 = pneg %p44
        $region95: #{tpu_custom_call.1} parent=92 // pred_check_branch
          %531 = sbr.rel (%p529) target = $region97
        $region96: #{tpu_custom_call.1} parent=92 // pred_region
          _
        $region97: #{tpu_custom_call.1} parent=92 // pred_fallthru
          _
        %s532 = sand.u32 %s31, 1
        %s533 = sand.u32 %s31, 1
        %s534 = smul.addr %s533, 192
        %s535 = scalar_lea.vmem [#allocation2], %s534
        %p536 = pneg %p44
        %p537 = pneg %p41
        %p538 = pneg %p65
        %p539 = pneg %p62
        %p540 = pneg %p86
        %p541 = pneg %p83
        %p542 = pneg %p107
        %p543 = pneg %p104
        %p544 = pneg %p128
        %p545 = pneg %p125
        %p546 = pneg %p149
        %p547 = pneg %p146
        %p548 = pneg %p170
        %p549 = pneg %p167
        %p550 = pneg %p191
        %p551 = pneg %p188
        %p552 = pneg %p212
        %p553 = pneg %p209
        %p554 = pneg %p238
        %p555 = pneg %p235
        %s556 = sand.u32 %s225, 1
        %s557 = scalar_lea.sflag [#allocation4], %s556
        %s558 = sand.u32 %s225, 1
        %s559 = smul.addr %s558, 128
        %s560 = scalar_lea.vmem [#allocation3], %s559
        %s561 = smul.u32 16, %s23
        %s562 = smul.u32 16, %s23
        %v564 = vld [vmem:[%s6] sm:$0x1]
        %v566 = vlaneseq
        %v567 = vshrl.u32 %v566, 7
        %v568 = vsub.s32 0, %v567
        %v569 = vrot.slane %v564, %v568
        %v571 = vld [vmem:[%s528] sm:$0xf]
        %v572 = vld [vmem:[%s528 + $0x4] sm:$0xf]
        %v573 = vld [vmem:[%s528 + $0x8] sm:$0xf]
        %v574 = vld [vmem:[%s528 + $0xc] sm:$0xf]
        %v575 = vld [vmem:[%s528 + $0x10] sm:$0xf]
        %v576 = vld [vmem:[%s528 + $0x14] sm:$0xf]
        %v577 = vld [vmem:[%s528 + $0x18] sm:$0xf]
        %v578 = vld [vmem:[%s528 + $0x1c] sm:$0xf]
        %v579 = vld [vmem:[%s528 + $0x20] sm:$0xf]
        %v580 = vld [vmem:[%s528 + $0x24] sm:$0xf]
        %v581 = vld [vmem:[%s528 + $0x28] sm:$0xf]
        %v582 = vld [vmem:[%s528 + $0x2c] sm:$0xf]
        %v583 = vld [vmem:[%s528 + $0x30] sm:$0xf]
        %v584 = vld [vmem:[%s528 + $0x34] sm:$0xf]
        %v585 = vld [vmem:[%s528 + $0x38] sm:$0xf]
        %v586 = vld [vmem:[%s528 + $0x3c] sm:$0xf]
        %v587 = vld [vmem:[%s1] sm:$0xf]
        %v588 = vld [vmem:[%s2] sm:$0x1]
        %v590 = vlaneseq
        %v591 = vshrl.u32 %v590, 7
        %v592 = vsub.s32 0, %v591
        %v593 = vrot.slane %v588, %v592
        %v611 = vunpack.c.l.b16 %v571
        %v612 = vunpack.c.l.b16 %v572
        %v613 = vunpack.c.l.b16 %v573
        %v614 = vunpack.c.l.b16 %v574
        %v615 = vunpack.c.l.b16 %v575
        %v616 = vunpack.c.l.b16 %v576
        %v617 = vunpack.c.l.b16 %v577
        %v618 = vunpack.c.l.b16 %v578
        %v619 = vunpack.c.l.b16 %v579
        %v620 = vunpack.c.l.b16 %v580
        %v621 = vunpack.c.l.b16 %v581
        %v622 = vunpack.c.l.b16 %v582
        %v623 = vunpack.c.l.b16 %v583
        %v624 = vunpack.c.l.b16 %v584
        %v625 = vunpack.c.l.b16 %v585
        %v626 = vunpack.c.l.b16 %v586
        %v627 = vpack.c.b16 %v612, %v611
        %v628 = vpack.c.b16 %v614, %v613
        %v629 = vpack.c.b16 %v616, %v615
        %v630 = vpack.c.b16 %v618, %v617
        %v631 = vpack.c.b16 %v620, %v619
        %v632 = vpack.c.b16 %v622, %v621
        %v633 = vpack.c.b16 %v624, %v623
        %v634 = vpack.c.b16 %v626, %v625
        %vm635 = vcmask 64512
        %v637 = vsel %vm635, %v627, 0
        %v640 = vsel %vm635, %v628, 0
        %v643 = vsel %vm635, %v629, 0
        %v646 = vsel %vm635, %v630, 0
        %v649 = vsel %vm635, %v631, 0
        %v652 = vsel %vm635, %v632, 0
        %v655 = vsel %vm635, %v633, 0
        %v658 = vsel %vm635, %v634, 0
        %vm660 = vcmask 1043456
        %v662 = vsel %vm660, %v587, 0
        %664 = vmatprep.subr.bf16.mxu0 0
        %665 = vmatpush1.bf16.msra.mxu0 %v662
        %666 = vmatprep.subr.bf16.mxu0 0
        %667 = vmatpush1.bf16.msra.mxu0 0
        %668 = vmatprep.subr.bf16.mxu0 0
        %669 = vmatpush1.bf16.msra.mxu0 0
        %670 = vmatprep.subr.bf16.mxu0 0
        %671 = vmatpush1.bf16.msra.mxu0 0
        %672 = vmatprep.subr.bf16.mxu0 0
        %673 = vmatpush1.bf16.msra.mxu0 0
        %674 = vmatprep.subr.bf16.mxu0 0
        %675 = vmatpush1.bf16.msra.mxu0 0
        %676 = vmatprep.subr.bf16.mxu0 0
        %677 = vmatpush1.bf16.msra.mxu0 0
        %678 = vmatprep.subr.bf16.mxu0 0
        %679 = vmatpush1.bf16.msra.mxu0 0
        %680 = vmatprep.subr.bf16.mxu0 0
        %681 = vmatpush1.bf16.msra.mxu0 0
        %682 = vmatprep.subr.bf16.mxu0 0
        %683 = vmatpush1.bf16.msra.mxu0 0
        %684 = vmatprep.subr.bf16.mxu0 0
        %685 = vmatpush1.bf16.msra.mxu0 0
        %686 = vmatprep.subr.bf16.mxu0 0
        %687 = vmatpush1.bf16.msra.mxu0 0
        %688 = vmatprep.subr.bf16.mxu0 0
        %689 = vmatpush1.bf16.msra.mxu0 0
        %690 = vmatprep.subr.bf16.mxu0 0
        %691 = vmatpush1.bf16.msra.mxu0 0
        %692 = vmatprep.subr.bf16.mxu0 0
        %693 = vmatpush1.bf16.msra.mxu0 0
        %694 = vmatprep.subr.bf16.mxu0 0
        %695 = vmatpush1.bf16.msra.mxu0 0
        %696 = vmatprep.mubr.bf16.mxu0 0
        %697 = vmatmul.mubr.bf16.gmra.mrb[0].mxu0 %v637
        %v698 = vpop.f32.mrb[0].mxu0
        %v699 = vadd.f32 %v593, %v698
        %v700 = vpop.f32.mrb[0].mxu0
        %v701 = vpop.f32.mrb[0].mxu0
        %v702 = vadd.f32 %v593, %v701
        %v703 = vpop.f32.mrb[0].mxu0
        %704 = vmatprep.mubr.bf16.mxu0 0
        %705 = vmatmul.mubr.bf16.gmra.mrb[0].mxu0 %v640
        %v706 = vpop.f32.mrb[0].mxu0
        %v707 = vadd.f32 %v593, %v706
        %v708 = vpop.f32.mrb[0].mxu0
        %v709 = vpop.f32.mrb[0].mxu0
        %v710 = vadd.f32 %v593, %v709
        %v711 = vpop.f32.mrb[0].mxu0
        %712 = vmatprep.mubr.bf16.mxu0 0
        %713 = vmatmul.mubr.bf16.gmra.mrb[0].mxu0 %v643
        %v714 = vpop.f32.mrb[0].mxu0
        %v715 = vadd.f32 %v593, %v714
        %v716 = vpop.f32.mrb[0].mxu0
        %v717 = vpop.f32.mrb[0].mxu0
        %v718 = vadd.f32 %v593, %v717
        %v719 = vpop.f32.mrb[0].mxu0
        %720 = vmatprep.mubr.bf16.mxu0 0
        %721 = vmatmul.mubr.bf16.gmra.mrb[0].mxu0 %v646
        %v722 = vpop.f32.mrb[0].mxu0
        %v723 = vadd.f32 %v593, %v722
        %v724 = vpop.f32.mrb[0].mxu0
        %v725 = vpop.f32.mrb[0].mxu0
        %v726 = vadd.f32 %v593, %v725
        %v727 = vpop.f32.mrb[0].mxu0
        %728 = vmatprep.mubr.bf16.mxu0 0
        %729 = vmatmul.mubr.bf16.gmra.mrb[0].mxu0 %v649
        %v730 = vpop.f32.mrb[0].mxu0
        %v731 = vadd.f32 %v593, %v730
        %v732 = vpop.f32.mrb[0].mxu0
        %v733 = vpop.f32.mrb[0].mxu0
        %v734 = vadd.f32 %v593, %v733
        %v735 = vpop.f32.mrb[0].mxu0
        %736 = vmatprep.mubr.bf16.mxu0 0
        %737 = vmatmul.mubr.bf16.gmra.mrb[0].mxu0 %v652
        %v738 = vpop.f32.mrb[0].mxu0
        %v739 = vadd.f32 %v593, %v738
        %v740 = vpop.f32.mrb[0].mxu0
        %v741 = vpop.f32.mrb[0].mxu0
        %v742 = vadd.f32 %v593, %v741
        %v743 = vpop.f32.mrb[0].mxu0
        %744 = vmatprep.mubr.bf16.mxu0 0
        %745 = vmatmul.mubr.bf16.gmra.mrb[0].mxu0 %v655
        %v746 = vpop.f32.mrb[0].mxu0
        %v747 = vadd.f32 %v593, %v746
        %v748 = vpop.f32.mrb[0].mxu0
        %v749 = vpop.f32.mrb[0].mxu0
        %v750 = vadd.f32 %v593, %v749
        %v751 = vpop.f32.mrb[0].mxu0
        %752 = vmatprep.mubr.bf16.mxu0 0
        %753 = vmatmul.mubr.bf16.gmra.mrb[0].mxu0 %v658
        %v754 = vpop.f32.mrb[0].mxu0
        %v755 = vadd.f32 %v593, %v754
        %v756 = vpop.f32.mrb[0].mxu0
        %v757 = vpop.f32.mrb[0].mxu0
        %v758 = vadd.f32 %v593, %v757
        %v759 = vpop.f32.mrb[0].mxu0
        %760 = vdwg.mxu0
        %v761 = vmax.f32 %v699, 0.0
        %v762 = vmax.f32 %v702, 0.0
        %v763 = vmax.f32 %v707, 0.0
        %v764 = vmax.f32 %v710, 0.0
        %v765 = vmax.f32 %v715, 0.0
        %v766 = vmax.f32 %v718, 0.0
        %v767 = vmax.f32 %v723, 0.0
        %v768 = vmax.f32 %v726, 0.0
        %v769 = vmax.f32 %v731, 0.0
        %v770 = vmax.f32 %v734, 0.0
        %v771 = vmax.f32 %v739, 0.0
        %v772 = vmax.f32 %v742, 0.0
        %v773 = vmax.f32 %v747, 0.0
        %v774 = vmax.f32 %v750, 0.0
        %v775 = vmax.f32 %v755, 0.0
        %v776 = vmax.f32 %v758, 0.0
        %v777 = vpack.c.bf16 %v762, %v761
        %v778 = vpack.c.bf16 %v764, %v763
        %v779 = vpack.c.bf16 %v766, %v765
        %v780 = vpack.c.bf16 %v768, %v767
        %v781 = vpack.c.bf16 %v770, %v769
        %v782 = vpack.c.bf16 %v772, %v771
        %v783 = vpack.c.bf16 %v774, %v773
        %v784 = vpack.c.bf16 %v776, %v775
        %v785 = vld [vmem:[%s3] sm:$0xf]
        %v786 = vld [vmem:[%s3 + $0x4] sm:$0xf]
        %v787 = vld [vmem:[%s3 + $0x8] sm:$0xf]
        %v788 = vld [vmem:[%s3 + $0xc] sm:$0xf]
        %v789 = vld [vmem:[%s3 + $0x10] sm:$0xf]
        %v790 = vld [vmem:[%s3 + $0x14] sm:$0xf]
        %v791 = vld [vmem:[%s3 + $0x18] sm:$0xf]
        %v792 = vld [vmem:[%s3 + $0x1c] sm:$0xf]
        %v793 = vld [vmem:[%s3 + $0x20] sm:$0xf]
        %v794 = vld [vmem:[%s3 + $0x24] sm:$0xf]
        %v795 = vld [vmem:[%s3 + $0x28] sm:$0xf]
        %v796 = vld [vmem:[%s3 + $0x2c] sm:$0xf]
        %v797 = vld [vmem:[%s3 + $0x30] sm:$0x3]
        %v798 = vld [vmem:[%s4] sm:$0x1]
        %v800 = vlaneseq
        %v801 = vshrl.u32 %v800, 7
        %v802 = vsub.s32 0, %v801
        %v803 = vrot.slane %v798, %v802
        %v818 = vunpack.c.l.b16 %v785
        %v819 = vunpack.c.l.b16 %v786
        %v820 = vunpack.c.l.b16 %v787
        %v821 = vunpack.c.l.b16 %v788
        %v822 = vunpack.c.l.b16 %v789
        %v823 = vunpack.c.l.b16 %v790
        %v824 = vunpack.c.l.b16 %v791
        %v825 = vunpack.c.l.b16 %v792
        %v826 = vunpack.c.l.b16 %v793
        %v827 = vunpack.c.l.b16 %v794
        %v828 = vunpack.c.l.b16 %v795
        %v829 = vunpack.c.l.b16 %v796
        %v830 = vunpack.c.l.b16 %v797
        %v831 = vpack.c.b16 %v819, %v818
        %v832 = vpack.c.b16 %v821, %v820
        %v833 = vpack.c.b16 %v823, %v822
        %v834 = vpack.c.b16 %v825, %v824
        %v835 = vpack.c.b16 %v827, %v826
        %v836 = vpack.c.b16 %v829, %v828
        %v837 = vpack.c.b16 %v830, %v830
        %vm844 = vcmask 818176
        %v846 = vsel %vm844, %v777, 0
        %v849 = vsel %vm844, %v778, 0
        %v852 = vsel %vm844, %v779, 0
        %v855 = vsel %vm844, %v780, 0
        %v858 = vsel %vm844, %v781, 0
        %v861 = vsel %vm844, %v782, 0
        %v864 = vsel %vm844, %v783, 0
        %v867 = vsel %vm844, %v784, 0
        %vm869 = vcmask 1041408
        %v871 = vsel %vm869, %v837, 0
        %873 = vmatprep.subr.bf16.mxu0 0
        %874 = vmatpush1.bf16.msra.mxu0 %v831
        %875 = vmatprep.subr.bf16.mxu0 0
        %876 = vmatpush1.bf16.msra.mxu0 %v832
        %877 = vmatprep.subr.bf16.mxu0 0
        %878 = vmatpush1.bf16.msra.mxu0 %v833
        %879 = vmatprep.subr.bf16.mxu0 0
        %880 = vmatpush1.bf16.msra.mxu0 %v834
        %881 = vmatprep.subr.bf16.mxu0 0
        %882 = vmatpush1.bf16.msra.mxu0 %v835
        %883 = vmatprep.subr.bf16.mxu0 0
        %884 = vmatpush1.bf16.msra.mxu0 %v836
        %885 = vmatprep.subr.bf16.mxu0 0
        %886 = vmatpush1.bf16.msra.mxu0 %v871
        %887 = vmatprep.subr.bf16.mxu0 0
        %888 = vmatpush1.bf16.msra.mxu0 0
        %889 = vmatprep.subr.bf16.mxu0 0
        %890 = vmatpush1.bf16.msra.mxu0 0
        %891 = vmatprep.subr.bf16.mxu0 0
        %892 = vmatpush1.bf16.msra.mxu0 0
        %893 = vmatprep.subr.bf16.mxu0 0
        %894 = vmatpush1.bf16.msra.mxu0 0
        %895 = vmatprep.subr.bf16.mxu0 0
        %896 = vmatpush1.bf16.msra.mxu0 0
        %897 = vmatprep.subr.bf16.mxu0 0
        %898 = vmatpush1.bf16.msra.mxu0 0
        %899 = vmatprep.subr.bf16.mxu0 0
        %900 = vmatpush1.bf16.msra.mxu0 0
        %901 = vmatprep.subr.bf16.mxu0 0
        %902 = vmatpush1.bf16.msra.mxu0 0
        %903 = vmatprep.subr.bf16.mxu0 0
        %904 = vmatpush1.bf16.msra.mxu0 0
        %905 = vmatprep.mubr.bf16.mxu0 0
        %906 = vmatmul.mubr.bf16.gmra.mrb[0].mxu0 %v846
        %v907 = vpop.f32.mrb[0].mxu0
        %v908 = vadd.f32 %v803, %v907
        %v909 = vpop.f32.mrb[0].mxu0
        %v910 = vpop.f32.mrb[0].mxu0
        %v911 = vadd.f32 %v803, %v910
        %v912 = vpop.f32.mrb[0].mxu0
        %913 = vmatprep.mubr.bf16.mxu0 0
        %914 = vmatmul.mubr.bf16.gmra.mrb[0].mxu0 %v849
        %v915 = vpop.f32.mrb[0].mxu0
        %v916 = vadd.f32 %v803, %v915
        %v917 = vpop.f32.mrb[0].mxu0
        %v918 = vpop.f32.mrb[0].mxu0
        %v919 = vadd.f32 %v803, %v918
        %v920 = vpop.f32.mrb[0].mxu0
        %921 = vmatprep.mubr.bf16.mxu0 0
        %922 = vmatmul.mubr.bf16.gmra.mrb[0].mxu0 %v852
        %v923 = vpop.f32.mrb[0].mxu0
        %v924 = vadd.f32 %v803, %v923
        %v925 = vpop.f32.mrb[0].mxu0
        %v926 = vpop.f32.mrb[0].mxu0
        %v927 = vadd.f32 %v803, %v926
        %v928 = vpop.f32.mrb[0].mxu0
        %929 = vmatprep.mubr.bf16.mxu0 0
        %930 = vmatmul.mubr.bf16.gmra.mrb[0].mxu0 %v855
        %v931 = vpop.f32.mrb[0].mxu0
        %v932 = vadd.f32 %v803, %v931
        %v933 = vpop.f32.mrb[0].mxu0
        %v934 = vpop.f32.mrb[0].mxu0
        %v935 = vadd.f32 %v803, %v934
        %v936 = vpop.f32.mrb[0].mxu0
        %937 = vmatprep.mubr.bf16.mxu0 0
        %938 = vmatmul.mubr.bf16.gmra.mrb[0].mxu0 %v858
        %v939 = vpop.f32.mrb[0].mxu0
        %v940 = vadd.f32 %v803, %v939
        %v941 = vpop.f32.mrb[0].mxu0
        %v942 = vpop.f32.mrb[0].mxu0
        %v943 = vadd.f32 %v803, %v942
        %v944 = vpop.f32.mrb[0].mxu0
        %945 = vmatprep.mubr.bf16.mxu0 0
        %946 = vmatmul.mubr.bf16.gmra.mrb[0].mxu0 %v861
        %v947 = vpop.f32.mrb[0].mxu0
        %v948 = vadd.f32 %v803, %v947
        %v949 = vpop.f32.mrb[0].mxu0
        %v950 = vpop.f32.mrb[0].mxu0
        %v951 = vadd.f32 %v803, %v950
        %v952 = vpop.f32.mrb[0].mxu0
        %953 = vmatprep.mubr.bf16.mxu0 0
        %954 = vmatmul.mubr.bf16.gmra.mrb[0].mxu0 %v864
        %v955 = vpop.f32.mrb[0].mxu0
        %v956 = vadd.f32 %v803, %v955
        %v957 = vpop.f32.mrb[0].mxu0
        %v958 = vpop.f32.mrb[0].mxu0
        %v959 = vadd.f32 %v803, %v958
        %v960 = vpop.f32.mrb[0].mxu0
        %961 = vmatprep.mubr.bf16.mxu0 0
        %962 = vmatmul.mubr.bf16.gmra.mrb[0].mxu0 %v867
        %v963 = vpop.f32.mrb[0].mxu0
        %v964 = vadd.f32 %v803, %v963
        %v965 = vpop.f32.mrb[0].mxu0
        %v966 = vpop.f32.mrb[0].mxu0
        %v967 = vadd.f32 %v803, %v966
        %v968 = vpop.f32.mrb[0].mxu0
        %969 = vdwg.mxu0
        %v970 = vmax.f32 %v908, 0.0
        %v971 = vmax.f32 %v911, 0.0
        %v972 = vmax.f32 %v916, 0.0
        %v973 = vmax.f32 %v919, 0.0
        %v974 = vmax.f32 %v924, 0.0
        %v975 = vmax.f32 %v927, 0.0
        %v976 = vmax.f32 %v932, 0.0
        %v977 = vmax.f32 %v935, 0.0
        %v978 = vmax.f32 %v940, 0.0
        %v979 = vmax.f32 %v943, 0.0
        %v980 = vmax.f32 %v948, 0.0
        %v981 = vmax.f32 %v951, 0.0
        %v982 = vmax.f32 %v956, 0.0
        %v983 = vmax.f32 %v959, 0.0
        %v984 = vmax.f32 %v964, 0.0
        %v985 = vmax.f32 %v967, 0.0
        %v986 = vpack.c.bf16 %v971, %v970
        %v987 = vpack.c.bf16 %v973, %v972
        %v988 = vpack.c.bf16 %v975, %v974
        %v989 = vpack.c.bf16 %v977, %v976
        %v990 = vpack.c.bf16 %v979, %v978
        %v991 = vpack.c.bf16 %v981, %v980
        %v992 = vpack.c.bf16 %v983, %v982
        %v993 = vpack.c.bf16 %v985, %v984
        %v994 = vld [vmem:[%s5] sm:$0xf]
        %v995 = vld [vmem:[%s5 + $0x4] sm:$0xf]
        %v996 = vld [vmem:[%s5 + $0x8] sm:$0x3]
        %v1000 = vunpack.c.l.b16 %v994
        %v1001 = vunpack.c.l.b16 %v995
        %v1002 = vunpack.c.l.b16 %v996
        %v1003 = vpack.c.b16 %v1001, %v1000
        %v1004 = vpack.c.b16 %v1002, %v1002
        %vm1006 = vcmask 162816
        %v1008 = vsel %vm1006, %v986, 0
        %v1011 = vsel %vm1006, %v987, 0
        %v1014 = vsel %vm1006, %v988, 0
        %v1017 = vsel %vm1006, %v989, 0
        %v1020 = vsel %vm1006, %v990, 0
        %v1023 = vsel %vm1006, %v991, 0
        %v1026 = vsel %vm1006, %v992, 0
        %v1029 = vsel %vm1006, %v993, 0
        %v1032 = vsel %vm869, %v1004, 0
        %1034 = vmatprep.subr.bf16.mxu0 0
        %1035 = vmatpush1.bf16.msra.mxu0 %v1003
        %1036 = vmatprep.subr.bf16.mxu0 0
        %1037 = vmatpush1.bf16.msra.mxu0 %v1032
        %1038 = vmatprep.subr.bf16.mxu0 0
        %1039 = vmatpush1.bf16.msra.mxu0 0
        %1040 = vmatprep.subr.bf16.mxu0 0
        %1041 = vmatpush1.bf16.msra.mxu0 0
        %1042 = vmatprep.subr.bf16.mxu0 0
        %1043 = vmatpush1.bf16.msra.mxu0 0
        %1044 = vmatprep.subr.bf16.mxu0 0
        %1045 = vmatpush1.bf16.msra.mxu0 0
        %1046 = vmatprep.subr.bf16.mxu0 0
        %1047 = vmatpush1.bf16.msra.mxu0 0
        %1048 = vmatprep.subr.bf16.mxu0 0
        %1049 = vmatpush1.bf16.msra.mxu0 0
        %1050 = vmatprep.subr.bf16.mxu0 0
        %1051 = vmatpush1.bf16.msra.mxu0 0
        %1052 = vmatprep.subr.bf16.mxu0 0
        %1053 = vmatpush1.bf16.msra.mxu0 0
        %1054 = vmatprep.subr.bf16.mxu0 0
        %1055 = vmatpush1.bf16.msra.mxu0 0
        %1056 = vmatprep.subr.bf16.mxu0 0
        %1057 = vmatpush1.bf16.msra.mxu0 0
        %1058 = vmatprep.subr.bf16.mxu0 0
        %1059 = vmatpush1.bf16.msra.mxu0 0
        %1060 = vmatprep.subr.bf16.mxu0 0
        %1061 = vmatpush1.bf16.msra.mxu0 0
        %1062 = vmatprep.subr.bf16.mxu0 0
        %1063 = vmatpush1.bf16.msra.mxu0 0
        %1064 = vmatprep.subr.bf16.mxu0 0
        %1065 = vmatpush1.bf16.msra.mxu0 0
        %1066 = vmatprep.mubr.bf16.mxu0 0
        %1067 = vmatmul.mubr.bf16.gmra.mrb[0].mxu0 %v1008
        %v1068 = vpop.f32.mrb[0].mxu0
        %v1069 = vadd.f32 0.0, %v1068
        %v1070 = vpop.f32.mrb[0].mxu0
        %v1071 = vpop.f32.mrb[0].mxu0
        %v1072 = vadd.f32 0.0, %v1071
        %v1073 = vpop.f32.mrb[0].mxu0
        %1074 = vmatprep.mubr.bf16.mxu0 0
        %1075 = vmatmul.mubr.bf16.gmra.mrb[0].mxu0 %v1011
        %v1076 = vpop.f32.mrb[0].mxu0
        %v1077 = vadd.f32 0.0, %v1076
        %v1078 = vpop.f32.mrb[0].mxu0
        %v1079 = vpop.f32.mrb[0].mxu0
        %v1080 = vadd.f32 0.0, %v1079
        %v1081 = vpop.f32.mrb[0].mxu0
        %1082 = vmatprep.mubr.bf16.mxu0 0
        %1083 = vmatmul.mubr.bf16.gmra.mrb[0].mxu0 %v1014
        %v1084 = vpop.f32.mrb[0].mxu0
        %v1085 = vadd.f32 0.0, %v1084
        %v1086 = vpop.f32.mrb[0].mxu0
        %v1087 = vpop.f32.mrb[0].mxu0
        %v1088 = vadd.f32 0.0, %v1087
        %v1089 = vpop.f32.mrb[0].mxu0
        %1090 = vmatprep.mubr.bf16.mxu0 0
        %1091 = vmatmul.mubr.bf16.gmra.mrb[0].mxu0 %v1017
        %v1092 = vpop.f32.mrb[0].mxu0
        %v1093 = vadd.f32 0.0, %v1092
        %v1094 = vpop.f32.mrb[0].mxu0
        %v1095 = vpop.f32.mrb[0].mxu0
        %v1096 = vadd.f32 0.0, %v1095
        %v1097 = vpop.f32.mrb[0].mxu0
        %1098 = vmatprep.mubr.bf16.mxu0 0
        %1099 = vmatmul.mubr.bf16.gmra.mrb[0].mxu0 %v1020
        %v1100 = vpop.f32.mrb[0].mxu0
        %v1101 = vadd.f32 0.0, %v1100
        %v1102 = vpop.f32.mrb[0].mxu0
        %v1103 = vpop.f32.mrb[0].mxu0
        %v1104 = vadd.f32 0.0, %v1103
        %v1105 = vpop.f32.mrb[0].mxu0
        %1106 = vmatprep.mubr.bf16.mxu0 0
        %1107 = vmatmul.mubr.bf16.gmra.mrb[0].mxu0 %v1023
        %v1108 = vpop.f32.mrb[0].mxu0
        %v1109 = vadd.f32 0.0, %v1108
        %v1110 = vpop.f32.mrb[0].mxu0
        %v1111 = vpop.f32.mrb[0].mxu0
        %v1112 = vadd.f32 0.0, %v1111
        %v1113 = vpop.f32.mrb[0].mxu0
        %1114 = vmatprep.mubr.bf16.mxu0 0
        %1115 = vmatmul.mubr.bf16.gmra.mrb[0].mxu0 %v1026
        %v1116 = vpop.f32.mrb[0].mxu0
        %v1117 = vadd.f32 0.0, %v1116
        %v1118 = vpop.f32.mrb[0].mxu0
        %v1119 = vpop.f32.mrb[0].mxu0
        %v1120 = vadd.f32 0.0, %v1119
        %v1121 = vpop.f32.mrb[0].mxu0
        %1122 = vmatprep.mubr.bf16.mxu0 0
        %1123 = vmatmul.mubr.bf16.gmra.mrb[0].mxu0 %v1029
        %v1124 = vpop.f32.mrb[0].mxu0
        %v1125 = vadd.f32 0.0, %v1124
        %v1126 = vpop.f32.mrb[0].mxu0
        %v1127 = vpop.f32.mrb[0].mxu0
        %v1128 = vadd.f32 0.0, %v1127
        %v1129 = vpop.f32.mrb[0].mxu0
        %1130 = vdwg.mxu0
        %v1131 = vadd.f32 %v569, %v1069
        %v1132 = vadd.f32 %v569, %v1072
        %v1133 = vadd.f32 %v569, %v1077
        %v1134 = vadd.f32 %v569, %v1080
        %v1135 = vadd.f32 %v569, %v1085
        %v1136 = vadd.f32 %v569, %v1088
        %v1137 = vadd.f32 %v569, %v1093
        %v1138 = vadd.f32 %v569, %v1096
        %v1139 = vadd.f32 %v569, %v1101
        %v1140 = vadd.f32 %v569, %v1104
        %v1141 = vadd.f32 %v569, %v1109
        %v1142 = vadd.f32 %v569, %v1112
        %v1143 = vadd.f32 %v569, %v1117
        %v1144 = vadd.f32 %v569, %v1120
        %v1145 = vadd.f32 %v569, %v1125
        %v1146 = vadd.f32 %v569, %v1128
        %s1147 = scalar_lea.vmem %s528, 64 [#allocation2]
        %v1148 = vld [vmem:[%s1147] sm:$0xf]
        %v1149 = vld [vmem:[%s1147 + $0x4] sm:$0xf]
        %v1150 = vld [vmem:[%s1147 + $0x8] sm:$0xf]
        %v1151 = vld [vmem:[%s1147 + $0xc] sm:$0xf]
        %v1152 = vld [vmem:[%s1147 + $0x10] sm:$0xf]
        %v1153 = vld [vmem:[%s1147 + $0x14] sm:$0xf]
        %v1154 = vld [vmem:[%s1147 + $0x18] sm:$0xf]
        %v1155 = vld [vmem:[%s1147 + $0x1c] sm:$0xf]
        %v1156 = vld [vmem:[%s1147 + $0x20] sm:$0xf]
        %v1157 = vld [vmem:[%s1147 + $0x24] sm:$0xf]
        %v1158 = vld [vmem:[%s1147 + $0x28] sm:$0xf]
        %v1159 = vld [vmem:[%s1147 + $0x2c] sm:$0xf]
        %v1160 = vld [vmem:[%s1147 + $0x30] sm:$0xf]
        %v1161 = vld [vmem:[%s1147 + $0x34] sm:$0xf]
        %v1162 = vld [vmem:[%s1147 + $0x38] sm:$0xf]
        %v1163 = vld [vmem:[%s1147 + $0x3c] sm:$0xf]
        %s1164 = scalar_lea.vmem %s1, 4
        %v1165 = vld [vmem:[%s1164] sm:$0xf]
        %s1166 = scalar_lea.vmem %s2, 1
        %v1167 = vld [vmem:[%s1166] sm:$0x1]
        %v1169 = vlaneseq
        %v1170 = vshrl.u32 %v1169, 7
        %v1171 = vsub.s32 0, %v1170
        %v1172 = vrot.slane %v1167, %v1171
        %v1190 = vunpack.c.l.b16 %v1148
        %v1191 = vunpack.c.l.b16 %v1149
        %v1192 = vunpack.c.l.b16 %v1150
        %v1193 = vunpack.c.l.b16 %v1151
        %v1194 = vunpack.c.l.b16 %v1152
        %v1195 = vunpack.c.l.b16 %v1153
        %v1196 = vunpack.c.l.b16 %v1154
        %v1197 = vunpack.c.l.b16 %v1155
        %v1198 = vunpack.c.l.b16 %v1156
        %v1199 = vunpack.c.l.b16 %v1157
        %v1200 = vunpack.c.l.b16 %v1158
        %v1201 = vunpack.c.l.b16 %v1159
        %v1202 = vunpack.c.l.b16 %v1160
        %v1203 = vunpack.c.l.b16 %v1161
        %v1204 = vunpack.c.l.b16 %v1162
        %v1205 = vunpack.c.l.b16 %v1163
        %v1206 = vpack.c.b16 %v1191, %v1190
        %v1207 = vpack.c.b16 %v1193, %v1192
        %v1208 = vpack.c.b16 %v1195, %v1194
        %v1209 = vpack.c.b16 %v1197, %v1196
        %v1210 = vpack.c.b16 %v1199, %v1198
        %v1211 = vpack.c.b16 %v1201, %v1200
        %v1212 = vpack.c.b16 %v1203, %v1202
        %v1213 = vpack.c.b16 %v1205, %v1204
        %v1215 = vsel %vm635, %v1206, 0
        %v1218 = vsel %vm635, %v1207, 0
        %v1221 = vsel %vm635, %v1208, 0
        %v1224 = vsel %vm635, %v1209, 0
        %v1227 = vsel %vm635, %v1210, 0
        %v1230 = vsel %vm635, %v1211, 0
        %v1233 = vsel %vm635, %v1212, 0
        %v1236 = vsel %vm635, %v1213, 0
        %v1239 = vsel %vm660, %v1165, 0
        %1241 = vmatprep.subr.bf16.mxu0 0
        %1242 = vmatpush1.bf16.msra.mxu0 %v1239
        %1243 = vmatprep.subr.bf16.mxu0 0
        %1244 = vmatpush1.bf16.msra.mxu0 0
        %1245 = vmatprep.subr.bf16.mxu0 0
        %1246 = vmatpush1.bf16.msra.mxu0 0
        %1247 = vmatprep.subr.bf16.mxu0 0
        %1248 = vmatpush1.bf16.msra.mxu0 0
        %1249 = vmatprep.subr.bf16.mxu0 0
        %1250 = vmatpush1.bf16.msra.mxu0 0
        %1251 = vmatprep.subr.bf16.mxu0 0
        %1252 = vmatpush1.bf16.msra.mxu0 0
        %1253 = vmatprep.subr.bf16.mxu0 0
        %1254 = vmatpush1.bf16.msra.mxu0 0
        %1255 = vmatprep.subr.bf16.mxu0 0
        %1256 = vmatpush1.bf16.msra.mxu0 0
        %1257 = vmatprep.subr.bf16.mxu0 0
        %1258 = vmatpush1.bf16.msra.mxu0 0
        %1259 = vmatprep.subr.bf16.mxu0 0
        %1260 = vmatpush1.bf16.msra.mxu0 0
        %1261 = vmatprep.subr.bf16.mxu0 0
        %1262 = vmatpush1.bf16.msra.mxu0 0
        %1263 = vmatprep.subr.bf16.mxu0 0
        %1264 = vmatpush1.bf16.msra.mxu0 0
        %1265 = vmatprep.subr.bf16.mxu0 0
        %1266 = vmatpush1.bf16.msra.mxu0 0
        %1267 = vmatprep.subr.bf16.mxu0 0
        %1268 = vmatpush1.bf16.msra.mxu0 0
        %1269 = vmatprep.subr.bf16.mxu0 0
        %1270 = vmatpush1.bf16.msra.mxu0 0
        %1271 = vmatprep.subr.bf16.mxu0 0
        %1272 = vmatpush1.bf16.msra.mxu0 0
        %1273 = vmatprep.mubr.bf16.mxu0 0
        %1274 = vmatmul.mubr.bf16.gmra.mrb[0].mxu0 %v1215
        %v1275 = vpop.f32.mrb[0].mxu0
        %v1276 = vadd.f32 %v1172, %v1275
        %v1277 = vpop.f32.mrb[0].mxu0
        %v1278 = vpop.f32.mrb[0].mxu0
        %v1279 = vadd.f32 %v1172, %v1278
        %v1280 = vpop.f32.mrb[0].mxu0
        %1281 = vmatprep.mubr.bf16.mxu0 0
        %1282 = vmatmul.mubr.bf16.gmra.mrb[0].mxu0 %v1218
        %v1283 = vpop.f32.mrb[0].mxu0
        %v1284 = vadd.f32 %v1172, %v1283
        %v1285 = vpop.f32.mrb[0].mxu0
        %v1286 = vpop.f32.mrb[0].mxu0
        %v1287 = vadd.f32 %v1172, %v1286
        %v1288 = vpop.f32.mrb[0].mxu0
        %1289 = vmatprep.mubr.bf16.mxu0 0
        %1290 = vmatmul.mubr.bf16.gmra.mrb[0].mxu0 %v1221
        %v1291 = vpop.f32.mrb[0].mxu0
        %v1292 = vadd.f32 %v1172, %v1291
        %v1293 = vpop.f32.mrb[0].mxu0
        %v1294 = vpop.f32.mrb[0].mxu0
        %v1295 = vadd.f32 %v1172, %v1294
        %v1296 = vpop.f32.mrb[0].mxu0
        %1297 = vmatprep.mubr.bf16.mxu0 0
        %1298 = vmatmul.mubr.bf16.gmra.mrb[0].mxu0 %v1224
        %v1299 = vpop.f32.mrb[0].mxu0
        %v1300 = vadd.f32 %v1172, %v1299
        %v1301 = vpop.f32.mrb[0].mxu0
        %v1302 = vpop.f32.mrb[0].mxu0
        %v1303 = vadd.f32 %v1172, %v1302
        %v1304 = vpop.f32.mrb[0].mxu0
        %1305 = vmatprep.mubr.bf16.mxu0 0
        %1306 = vmatmul.mubr.bf16.gmra.mrb[0].mxu0 %v1227
        %v1307 = vpop.f32.mrb[0].mxu0
        %v1308 = vadd.f32 %v1172, %v1307
        %v1309 = vpop.f32.mrb[0].mxu0
        %v1310 = vpop.f32.mrb[0].mxu0
        %v1311 = vadd.f32 %v1172, %v1310
        %v1312 = vpop.f32.mrb[0].mxu0
        %1313 = vmatprep.mubr.bf16.mxu0 0
        %1314 = vmatmul.mubr.bf16.gmra.mrb[0].mxu0 %v1230
        %v1315 = vpop.f32.mrb[0].mxu0
        %v1316 = vadd.f32 %v1172, %v1315
        %v1317 = vpop.f32.mrb[0].mxu0
        %v1318 = vpop.f32.mrb[0].mxu0
        %v1319 = vadd.f32 %v1172, %v1318
        %v1320 = vpop.f32.mrb[0].mxu0
        %1321 = vmatprep.mubr.bf16.mxu0 0
        %1322 = vmatmul.mubr.bf16.gmra.mrb[0].mxu0 %v1233
        %v1323 = vpop.f32.mrb[0].mxu0
        %v1324 = vadd.f32 %v1172, %v1323
        %v1325 = vpop.f32.mrb[0].mxu0
        %v1326 = vpop.f32.mrb[0].mxu0
        %v1327 = vadd.f32 %v1172, %v1326
        %v1328 = vpop.f32.mrb[0].mxu0
        %1329 = vmatprep.mubr.bf16.mxu0 0
        %1330 = vmatmul.mubr.bf16.gmra.mrb[0].mxu0 %v1236
        %v1331 = vpop.f32.mrb[0].mxu0
        %v1332 = vadd.f32 %v1172, %v1331
        %v1333 = vpop.f32.mrb[0].mxu0
        %v1334 = vpop.f32.mrb[0].mxu0
        %v1335 = vadd.f32 %v1172, %v1334
        %v1336 = vpop.f32.mrb[0].mxu0
        %1337 = vdwg.mxu0
        %v1338 = vmax.f32 %v1276, 0.0
        %v1339 = vmax.f32 %v1279, 0.0
        %v1340 = vmax.f32 %v1284, 0.0
        %v1341 = vmax.f32 %v1287, 0.0
        %v1342 = vmax.f32 %v1292, 0.0
        %v1343 = vmax.f32 %v1295, 0.0
        %v1344 = vmax.f32 %v1300, 0.0
        %v1345 = vmax.f32 %v1303, 0.0
        %v1346 = vmax.f32 %v1308, 0.0
        %v1347 = vmax.f32 %v1311, 0.0
        %v1348 = vmax.f32 %v1316, 0.0
        %v1349 = vmax.f32 %v1319, 0.0
        %v1350 = vmax.f32 %v1324, 0.0
        %v1351 = vmax.f32 %v1327, 0.0
        %v1352 = vmax.f32 %v1332, 0.0
        %v1353 = vmax.f32 %v1335, 0.0
        %v1354 = vpack.c.bf16 %v1339, %v1338
        %v1355 = vpack.c.bf16 %v1341, %v1340
        %v1356 = vpack.c.bf16 %v1343, %v1342
        %v1357 = vpack.c.bf16 %v1345, %v1344
        %v1358 = vpack.c.bf16 %v1347, %v1346
        %v1359 = vpack.c.bf16 %v1349, %v1348
        %v1360 = vpack.c.bf16 %v1351, %v1350
        %v1361 = vpack.c.bf16 %v1353, %v1352
        %s1362 = scalar_lea.vmem %s3, 52
        %v1363 = vld [vmem:[%s1362] sm:$0xf]
        %v1364 = vld [vmem:[%s1362 + $0x4] sm:$0xf]
        %v1365 = vld [vmem:[%s1362 + $0x8] sm:$0xf]
        %v1366 = vld [vmem:[%s1362 + $0xc] sm:$0xf]
        %v1367 = vld [vmem:[%s1362 + $0x10] sm:$0xf]
        %v1368 = vld [vmem:[%s1362 + $0x14] sm:$0xf]
        %v1369 = vld [vmem:[%s1362 + $0x18] sm:$0xf]
        %v1370 = vld [vmem:[%s1362 + $0x1c] sm:$0xf]
        %v1371 = vld [vmem:[%s1362 + $0x20] sm:$0xf]
        %v1372 = vld [vmem:[%s1362 + $0x24] sm:$0xf]
        %v1373 = vld [vmem:[%s1362 + $0x28] sm:$0xf]
        %v1374 = vld [vmem:[%s1362 + $0x2c] sm:$0xf]
        %v1375 = vld [vmem:[%s1362 + $0x30] sm:$0x3]
        %s1376 = scalar_lea.vmem %s4, 1
        %v1377 = vld [vmem:[%s1376] sm:$0x1]
        %v1379 = vlaneseq
        %v1380 = vshrl.u32 %v1379, 7
        %v1381 = vsub.s32 0, %v1380
        %v1382 = vrot.slane %v1377, %v1381
        %v1397 = vunpack.c.l.b16 %v1363
        %v1398 = vunpack.c.l.b16 %v1364
        %v1399 = vunpack.c.l.b16 %v1365
        %v1400 = vunpack.c.l.b16 %v1366
        %v1401 = vunpack.c.l.b16 %v1367
        %v1402 = vunpack.c.l.b16 %v1368
        %v1403 = vunpack.c.l.b16 %v1369
        %v1404 = vunpack.c.l.b16 %v1370
        %v1405 = vunpack.c.l.b16 %v1371
        %v1406 = vunpack.c.l.b16 %v1372
        %v1407 = vunpack.c.l.b16 %v1373
        %v1408 = vunpack.c.l.b16 %v1374
        %v1409 = vunpack.c.l.b16 %v1375
        %v1410 = vpack.c.b16 %v1398, %v1397
        %v1411 = vpack.c.b16 %v1400, %v1399
        %v1412 = vpack.c.b16 %v1402, %v1401
        %v1413 = vpack.c.b16 %v1404, %v1403
        %v1414 = vpack.c.b16 %v1406, %v1405
        %v1415 = vpack.c.b16 %v1408, %v1407
        %v1416 = vpack.c.b16 %v1409, %v1409
        %v1424 = vsel %vm844, %v1354, 0
        %v1427 = vsel %vm844, %v1355, 0
        %v1430 = vsel %vm844, %v1356, 0
        %v1433 = vsel %vm844, %v1357, 0
        %v1436 = vsel %vm844, %v1358, 0
        %v1439 = vsel %vm844, %v1359, 0
        %v1442 = vsel %vm844, %v1360, 0
        %v1445 = vsel %vm844, %v1361, 0
        %v1448 = vsel %vm869, %v1416, 0
        %1450 = vmatprep.subr.bf16.mxu0 0
        %1451 = vmatpush1.bf16.msra.mxu0 %v1410
        %1452 = vmatprep.subr.bf16.mxu0 0
        %1453 = vmatpush1.bf16.msra.mxu0 %v1411
        %1454 = vmatprep.subr.bf16.mxu0 0
        %1455 = vmatpush1.bf16.msra.mxu0 %v1412
        %1456 = vmatprep.subr.bf16.mxu0 0
        %1457 = vmatpush1.bf16.msra.mxu0 %v1413
        %1458 = vmatprep.subr.bf16.mxu0 0
        %1459 = vmatpush1.bf16.msra.mxu0 %v1414
        %1460 = vmatprep.subr.bf16.mxu0 0
        %1461 = vmatpush1.bf16.msra.mxu0 %v1415
        %1462 = vmatprep.subr.bf16.mxu0 0
        %1463 = vmatpush1.bf16.msra.mxu0 %v1448
        %1464 = vmatprep.subr.bf16.mxu0 0
        %1465 = vmatpush1.bf16.msra.mxu0 0
        %1466 = vmatprep.subr.bf16.mxu0 0
        %1467 = vmatpush1.bf16.msra.mxu0 0
        %1468 = vmatprep.subr.bf16.mxu0 0
        %1469 = vmatpush1.bf16.msra.mxu0 0
        %1470 = vmatprep.subr.bf16.mxu0 0
        %1471 = vmatpush1.bf16.msra.mxu0 0
        %1472 = vmatprep.subr.bf16.mxu0 0
        %1473 = vmatpush1.bf16.msra.mxu0 0
        %1474 = vmatprep.subr.bf16.mxu0 0
        %1475 = vmatpush1.bf16.msra.mxu0 0
        %1476 = vmatprep.subr.bf16.mxu0 0
        %1477 = vmatpush1.bf16.msra.mxu0 0
        %1478 = vmatprep.subr.bf16.mxu0 0
        %1479 = vmatpush1.bf16.msra.mxu0 0
        %1480 = vmatprep.subr.bf16.mxu0 0
        %1481 = vmatpush1.bf16.msra.mxu0 0
        %1482 = vmatprep.mubr.bf16.mxu0 0
        %1483 = vmatmul.mubr.bf16.gmra.mrb[0].mxu0 %v1424
        %v1484 = vpop.f32.mrb[0].mxu0
        %v1485 = vadd.f32 %v1382, %v1484
        %v1486 = vpop.f32.mrb[0].mxu0
        %v1487 = vpop.f32.mrb[0].mxu0
        %v1488 = vadd.f32 %v1382, %v1487
        %v1489 = vpop.f32.mrb[0].mxu0
        %1490 = vmatprep.mubr.bf16.mxu0 0
        %1491 = vmatmul.mubr.bf16.gmra.mrb[0].mxu0 %v1427
        %v1492 = vpop.f32.mrb[0].mxu0
        %v1493 = vadd.f32 %v1382, %v1492
        %v1494 = vpop.f32.mrb[0].mxu0
        %v1495 = vpop.f32.mrb[0].mxu0
        %v1496 = vadd.f32 %v1382, %v1495
        %v1497 = vpop.f32.mrb[0].mxu0
        %1498 = vmatprep.mubr.bf16.mxu0 0
        %1499 = vmatmul.mubr.bf16.gmra.mrb[0].mxu0 %v1430
        %v1500 = vpop.f32.mrb[0].mxu0
        %v1501 = vadd.f32 %v1382, %v1500
        %v1502 = vpop.f32.mrb[0].mxu0
        %v1503 = vpop.f32.mrb[0].mxu0
        %v1504 = vadd.f32 %v1382, %v1503
        %v1505 = vpop.f32.mrb[0].mxu0
        %1506 = vmatprep.mubr.bf16.mxu0 0
        %1507 = vmatmul.mubr.bf16.gmra.mrb[0].mxu0 %v1433
        %v1508 = vpop.f32.mrb[0].mxu0
        %v1509 = vadd.f32 %v1382, %v1508
        %v1510 = vpop.f32.mrb[0].mxu0
        %v1511 = vpop.f32.mrb[0].mxu0
        %v1512 = vadd.f32 %v1382, %v1511
        %v1513 = vpop.f32.mrb[0].mxu0
        %1514 = vmatprep.mubr.bf16.mxu0 0
        %1515 = vmatmul.mubr.bf16.gmra.mrb[0].mxu0 %v1436
        %v1516 = vpop.f32.mrb[0].mxu0
        %v1517 = vadd.f32 %v1382, %v1516
        %v1518 = vpop.f32.mrb[0].mxu0
        %v1519 = vpop.f32.mrb[0].mxu0
        %v1520 = vadd.f32 %v1382, %v1519
        %v1521 = vpop.f32.mrb[0].mxu0
        %1522 = vmatprep.mubr.bf16.mxu0 0
        %1523 = vmatmul.mubr.bf16.gmra.mrb[0].mxu0 %v1439
        %v1524 = vpop.f32.mrb[0].mxu0
        %v1525 = vadd.f32 %v1382, %v1524
        %v1526 = vpop.f32.mrb[0].mxu0
        %v1527 = vpop.f32.mrb[0].mxu0
        %v1528 = vadd.f32 %v1382, %v1527
        %v1529 = vpop.f32.mrb[0].mxu0
        %1530 = vmatprep.mubr.bf16.mxu0 0
        %1531 = vmatmul.mubr.bf16.gmra.mrb[0].mxu0 %v1442
        %v1532 = vpop.f32.mrb[0].mxu0
        %v1533 = vadd.f32 %v1382, %v1532
        %v1534 = vpop.f32.mrb[0].mxu0
        %v1535 = vpop.f32.mrb[0].mxu0
        %v1536 = vadd.f32 %v1382, %v1535
        %v1537 = vpop.f32.mrb[0].mxu0
        %1538 = vmatprep.mubr.bf16.mxu0 0
        %1539 = vmatmul.mubr.bf16.gmra.mrb[0].mxu0 %v1445
        %v1540 = vpop.f32.mrb[0].mxu0
        %v1541 = vadd.f32 %v1382, %v1540
        %v1542 = vpop.f32.mrb[0].mxu0
        %v1543 = vpop.f32.mrb[0].mxu0
        %v1544 = vadd.f32 %v1382, %v1543
        %v1545 = vpop.f32.mrb[0].mxu0
        %1546 = vdwg.mxu0
        %v1547 = vmax.f32 %v1485, 0.0
        %v1548 = vmax.f32 %v1488, 0.0
        %v1549 = vmax.f32 %v1493, 0.0
        %v1550 = vmax.f32 %v1496, 0.0
        %v1551 = vmax.f32 %v1501, 0.0
        %v1552 = vmax.f32 %v1504, 0.0
        %v1553 = vmax.f32 %v1509, 0.0
        %v1554 = vmax.f32 %v1512, 0.0
        %v1555 = vmax.f32 %v1517, 0.0
        %v1556 = vmax.f32 %v1520, 0.0
        %v1557 = vmax.f32 %v1525, 0.0
        %v1558 = vmax.f32 %v1528, 0.0
        %v1559 = vmax.f32 %v1533, 0.0
        %v1560 = vmax.f32 %v1536, 0.0
        %v1561 = vmax.f32 %v1541, 0.0
        %v1562 = vmax.f32 %v1544, 0.0
        %v1563 = vpack.c.bf16 %v1548, %v1547
        %v1564 = vpack.c.bf16 %v1550, %v1549
        %v1565 = vpack.c.bf16 %v1552, %v1551
        %v1566 = vpack.c.bf16 %v1554, %v1553
        %v1567 = vpack.c.bf16 %v1556, %v1555
        %v1568 = vpack.c.bf16 %v1558, %v1557
        %v1569 = vpack.c.bf16 %v1560, %v1559
        %v1570 = vpack.c.bf16 %v1562, %v1561
        %s1571 = scalar_lea.vmem %s5, 12
        %v1572 = vld [vmem:[%s1571] sm:$0xf]
        %v1573 = vld [vmem:[%s1571 + $0x4] sm:$0xf]
        %v1574 = vld [vmem:[%s1571 + $0x8] sm:$0x3]
        %v1578 = vunpack.c.l.b16 %v1572
        %v1579 = vunpack.c.l.b16 %v1573
        %v1580 = vunpack.c.l.b16 %v1574
        %v1581 = vpack.c.b16 %v1579, %v1578
        %v1582 = vpack.c.b16 %v1580, %v1580
        %v1585 = vsel %vm1006, %v1563, 0
        %v1588 = vsel %vm1006, %v1564, 0
        %v1591 = vsel %vm1006, %v1565, 0
        %v1594 = vsel %vm1006, %v1566, 0
        %v1597 = vsel %vm1006, %v1567, 0
        %v1600 = vsel %vm1006, %v1568, 0
        %v1603 = vsel %vm1006, %v1569, 0
        %v1606 = vsel %vm1006, %v1570, 0
        %v1609 = vsel %vm869, %v1582, 0
        %1611 = vmatprep.subr.bf16.mxu0 0
        %1612 = vmatpush1.bf16.msra.mxu0 %v1581
        %1613 = vmatprep.subr.bf16.mxu0 0
        %1614 = vmatpush1.bf16.msra.mxu0 %v1609
        %1615 = vmatprep.subr.bf16.mxu0 0
        %1616 = vmatpush1.bf16.msra.mxu0 0
        %1617 = vmatprep.subr.bf16.mxu0 0
        %1618 = vmatpush1.bf16.msra.mxu0 0
        %1619 = vmatprep.subr.bf16.mxu0 0
        %1620 = vmatpush1.bf16.msra.mxu0 0
        %1621 = vmatprep.subr.bf16.mxu0 0
        %1622 = vmatpush1.bf16.msra.mxu0 0
        %1623 = vmatprep.subr.bf16.mxu0 0
        %1624 = vmatpush1.bf16.msra.mxu0 0
        %1625 = vmatprep.subr.bf16.mxu0 0
        %1626 = vmatpush1.bf16.msra.mxu0 0
        %1627 = vmatprep.subr.bf16.mxu0 0
        %1628 = vmatpush1.bf16.msra.mxu0 0
        %1629 = vmatprep.subr.bf16.mxu0 0
        %1630 = vmatpush1.bf16.msra.mxu0 0
        %1631 = vmatprep.subr.bf16.mxu0 0
        %1632 = vmatpush1.bf16.msra.mxu0 0
        %1633 = vmatprep.subr.bf16.mxu0 0
        %1634 = vmatpush1.bf16.msra.mxu0 0
        %1635 = vmatprep.subr.bf16.mxu0 0
        %1636 = vmatpush1.bf16.msra.mxu0 0
        %1637 = vmatprep.subr.bf16.mxu0 0
        %1638 = vmatpush1.bf16.msra.mxu0 0
        %1639 = vmatprep.subr.bf16.mxu0 0
        %1640 = vmatpush1.bf16.msra.mxu0 0
        %1641 = vmatprep.subr.bf16.mxu0 0
        %1642 = vmatpush1.bf16.msra.mxu0 0
        %1643 = vmatprep.mubr.bf16.mxu0 0
        %1644 = vmatmul.mubr.bf16.gmra.mrb[0].mxu0 %v1585
        %v1645 = vpop.f32.mrb[0].mxu0
        %v1646 = vadd.f32 0.0, %v1645
        %v1647 = vpop.f32.mrb[0].mxu0
        %v1648 = vpop.f32.mrb[0].mxu0
        %v1649 = vadd.f32 0.0, %v1648
        %v1650 = vpop.f32.mrb[0].mxu0
        %1651 = vmatprep.mubr.bf16.mxu0 0
        %1652 = vmatmul.mubr.bf16.gmra.mrb[0].mxu0 %v1588
        %v1653 = vpop.f32.mrb[0].mxu0
        %v1654 = vadd.f32 0.0, %v1653
        %v1655 = vpop.f32.mrb[0].mxu0
        %v1656 = vpop.f32.mrb[0].mxu0
        %v1657 = vadd.f32 0.0, %v1656
        %v1658 = vpop.f32.mrb[0].mxu0
        %1659 = vmatprep.mubr.bf16.mxu0 0
        %1660 = vmatmul.mubr.bf16.gmra.mrb[0].mxu0 %v1591
        %v1661 = vpop.f32.mrb[0].mxu0
        %v1662 = vadd.f32 0.0, %v1661
        %v1663 = vpop.f32.mrb[0].mxu0
        %v1664 = vpop.f32.mrb[0].mxu0
        %v1665 = vadd.f32 0.0, %v1664
        %v1666 = vpop.f32.mrb[0].mxu0
        %1667 = vmatprep.mubr.bf16.mxu0 0
        %1668 = vmatmul.mubr.bf16.gmra.mrb[0].mxu0 %v1594
        %v1669 = vpop.f32.mrb[0].mxu0
        %v1670 = vadd.f32 0.0, %v1669
        %v1671 = vpop.f32.mrb[0].mxu0
        %v1672 = vpop.f32.mrb[0].mxu0
        %v1673 = vadd.f32 0.0, %v1672
        %v1674 = vpop.f32.mrb[0].mxu0
        %1675 = vmatprep.mubr.bf16.mxu0 0
        %1676 = vmatmul.mubr.bf16.gmra.mrb[0].mxu0 %v1597
        %v1677 = vpop.f32.mrb[0].mxu0
        %v1678 = vadd.f32 0.0, %v1677
        %v1679 = vpop.f32.mrb[0].mxu0
        %v1680 = vpop.f32.mrb[0].mxu0
        %v1681 = vadd.f32 0.0, %v1680
        %v1682 = vpop.f32.mrb[0].mxu0
        %1683 = vmatprep.mubr.bf16.mxu0 0
        %1684 = vmatmul.mubr.bf16.gmra.mrb[0].mxu0 %v1600
        %v1685 = vpop.f32.mrb[0].mxu0
        %v1686 = vadd.f32 0.0, %v1685
        %v1687 = vpop.f32.mrb[0].mxu0
        %v1688 = vpop.f32.mrb[0].mxu0
        %v1689 = vadd.f32 0.0, %v1688
        %v1690 = vpop.f32.mrb[0].mxu0
        %1691 = vmatprep.mubr.bf16.mxu0 0
        %1692 = vmatmul.mubr.bf16.gmra.mrb[0].mxu0 %v1603
        %v1693 = vpop.f32.mrb[0].mxu0
        %v1694 = vadd.f32 0.0, %v1693
        %v1695 = vpop.f32.mrb[0].mxu0
        %v1696 = vpop.f32.mrb[0].mxu0
        %v1697 = vadd.f32 0.0, %v1696
        %v1698 = vpop.f32.mrb[0].mxu0
        %1699 = vmatprep.mubr.bf16.mxu0 0
        %1700 = vmatmul.mubr.bf16.gmra.mrb[0].mxu0 %v1606
        %v1701 = vpop.f32.mrb[0].mxu0
        %v1702 = vadd.f32 0.0, %v1701
        %v1703 = vpop.f32.mrb[0].mxu0
        %v1704 = vpop.f32.mrb[0].mxu0
        %v1705 = vadd.f32 0.0, %v1704
        %v1706 = vpop.f32.mrb[0].mxu0
        %1707 = vdwg.mxu0
        %v1708 = vadd.f32 %v1131, %v1646
        %v1709 = vadd.f32 %v1132, %v1649
        %v1710 = vadd.f32 %v1133, %v1654
        %v1711 = vadd.f32 %v1134, %v1657
        %v1712 = vadd.f32 %v1135, %v1662
        %v1713 = vadd.f32 %v1136, %v1665
        %v1714 = vadd.f32 %v1137, %v1670
        %v1715 = vadd.f32 %v1138, %v1673
        %v1716 = vadd.f32 %v1139, %v1678
        %v1717 = vadd.f32 %v1140, %v1681
        %v1718 = vadd.f32 %v1141, %v1686
        %v1719 = vadd.f32 %v1142, %v1689
        %v1720 = vadd.f32 %v1143, %v1694
        %v1721 = vadd.f32 %v1144, %v1697
        %v1722 = vadd.f32 %v1145, %v1702
        %v1723 = vadd.f32 %v1146, %v1705
        %s1724 = scalar_lea.vmem %s528, 128 [#allocation2]
        %v1725 = vld [vmem:[%s1724] sm:$0xf]
        %v1726 = vld [vmem:[%s1724 + $0x4] sm:$0xf]
        %v1727 = vld [vmem:[%s1724 + $0x8] sm:$0xf]
        %v1728 = vld [vmem:[%s1724 + $0xc] sm:$0xf]
        %v1729 = vld [vmem:[%s1724 + $0x10] sm:$0xf]
        %v1730 = vld [vmem:[%s1724 + $0x14] sm:$0xf]
        %v1731 = vld [vmem:[%s1724 + $0x18] sm:$0xf]
        %v1732 = vld [vmem:[%s1724 + $0x1c] sm:$0xf]
        %v1733 = vld [vmem:[%s1724 + $0x20] sm:$0xf]
        %v1734 = vld [vmem:[%s1724 + $0x24] sm:$0xf]
        %v1735 = vld [vmem:[%s1724 + $0x28] sm:$0xf]
        %v1736 = vld [vmem:[%s1724 + $0x2c] sm:$0xf]
        %v1737 = vld [vmem:[%s1724 + $0x30] sm:$0xf]
        %v1738 = vld [vmem:[%s1724 + $0x34] sm:$0xf]
        %v1739 = vld [vmem:[%s1724 + $0x38] sm:$0xf]
        %v1740 = vld [vmem:[%s1724 + $0x3c] sm:$0xf]
        %s1741 = scalar_lea.vmem %s1, 8
        %v1742 = vld [vmem:[%s1741] sm:$0xf]
        %s1743 = scalar_lea.vmem %s2, 2
        %v1744 = vld [vmem:[%s1743] sm:$0x1]
        %v1746 = vlaneseq
        %v1747 = vshrl.u32 %v1746, 7
        %v1748 = vsub.s32 0, %v1747
        %v1749 = vrot.slane %v1744, %v1748
        %v1767 = vunpack.c.l.b16 %v1725
        %v1768 = vunpack.c.l.b16 %v1726
        %v1769 = vunpack.c.l.b16 %v1727
        %v1770 = vunpack.c.l.b16 %v1728
        %v1771 = vunpack.c.l.b16 %v1729
        %v1772 = vunpack.c.l.b16 %v1730
        %v1773 = vunpack.c.l.b16 %v1731
        %v1774 = vunpack.c.l.b16 %v1732
        %v1775 = vunpack.c.l.b16 %v1733
        %v1776 = vunpack.c.l.b16 %v1734
        %v1777 = vunpack.c.l.b16 %v1735
        %v1778 = vunpack.c.l.b16 %v1736
        %v1779 = vunpack.c.l.b16 %v1737
        %v1780 = vunpack.c.l.b16 %v1738
        %v1781 = vunpack.c.l.b16 %v1739
        %v1782 = vunpack.c.l.b16 %v1740
        %v1783 = vpack.c.b16 %v1768, %v1767
        %v1784 = vpack.c.b16 %v1770, %v1769
        %v1785 = vpack.c.b16 %v1772, %v1771
        %v1786 = vpack.c.b16 %v1774, %v1773
        %v1787 = vpack.c.b16 %v1776, %v1775
        %v1788 = vpack.c.b16 %v1778, %v1777
        %v1789 = vpack.c.b16 %v1780, %v1779
        %v1790 = vpack.c.b16 %v1782, %v1781
        %v1792 = vsel %vm635, %v1783, 0
        %v1795 = vsel %vm635, %v1784, 0
        %v1798 = vsel %vm635, %v1785, 0
        %v1801 = vsel %vm635, %v1786, 0
        %v1804 = vsel %vm635, %v1787, 0
        %v1807 = vsel %vm635, %v1788, 0
        %v1810 = vsel %vm635, %v1789, 0
        %v1813 = vsel %vm635, %v1790, 0
        %v1816 = vsel %vm660, %v1742, 0
        %1818 = vmatprep.subr.bf16.mxu0 0
        %1819 = vmatpush1.bf16.msra.mxu0 %v1816
        %1820 = vmatprep.subr.bf16.mxu0 0
        %1821 = vmatpush1.bf16.msra.mxu0 0
        %1822 = vmatprep.subr.bf16.mxu0 0
        %1823 = vmatpush1.bf16.msra.mxu0 0
        %1824 = vmatprep.subr.bf16.mxu0 0
        %1825 = vmatpush1.bf16.msra.mxu0 0
        %1826 = vmatprep.subr.bf16.mxu0 0
        %1827 = vmatpush1.bf16.msra.mxu0 0
        %1828 = vmatprep.subr.bf16.mxu0 0
        %1829 = vmatpush1.bf16.msra.mxu0 0
        %1830 = vmatprep.subr.bf16.mxu0 0
        %1831 = vmatpush1.bf16.msra.mxu0 0
        %1832 = vmatprep.subr.bf16.mxu0 0
        %1833 = vmatpush1.bf16.msra.mxu0 0
        %1834 = vmatprep.subr.bf16.mxu0 0
        %1835 = vmatpush1.bf16.msra.mxu0 0
        %1836 = vmatprep.subr.bf16.mxu0 0
        %1837 = vmatpush1.bf16.msra.mxu0 0
        %1838 = vmatprep.subr.bf16.mxu0 0
        %1839 = vmatpush1.bf16.msra.mxu0 0
        %1840 = vmatprep.subr.bf16.mxu0 0
        %1841 = vmatpush1.bf16.msra.mxu0 0
        %1842 = vmatprep.subr.bf16.mxu0 0
        %1843 = vmatpush1.bf16.msra.mxu0 0
        %1844 = vmatprep.subr.bf16.mxu0 0
        %1845 = vmatpush1.bf16.msra.mxu0 0
        %1846 = vmatprep.subr.bf16.mxu0 0
        %1847 = vmatpush1.bf16.msra.mxu0 0
        %1848 = vmatprep.subr.bf16.mxu0 0
        %1849 = vmatpush1.bf16.msra.mxu0 0
        %1850 = vmatprep.mubr.bf16.mxu0 0
        %1851 = vmatmul.mubr.bf16.gmra.mrb[0].mxu0 %v1792
        %v1852 = vpop.f32.mrb[0].mxu0
        %v1853 = vadd.f32 %v1749, %v1852
        %v1854 = vpop.f32.mrb[0].mxu0
        %v1855 = vpop.f32.mrb[0].mxu0
        %v1856 = vadd.f32 %v1749, %v1855
        %v1857 = vpop.f32.mrb[0].mxu0
        %1858 = vmatprep.mubr.bf16.mxu0 0
        %1859 = vmatmul.mubr.bf16.gmra.mrb[0].mxu0 %v1795
        %v1860 = vpop.f32.mrb[0].mxu0
        %v1861 = vadd.f32 %v1749, %v1860
        %v1862 = vpop.f32.mrb[0].mxu0
        %v1863 = vpop.f32.mrb[0].mxu0
        %v1864 = vadd.f32 %v1749, %v1863
        %v1865 = vpop.f32.mrb[0].mxu0
        %1866 = vmatprep.mubr.bf16.mxu0 0
        %1867 = vmatmul.mubr.bf16.gmra.mrb[0].mxu0 %v1798
        %v1868 = vpop.f32.mrb[0].mxu0
        %v1869 = vadd.f32 %v1749, %v1868
        %v1870 = vpop.f32.mrb[0].mxu0
        %v1871 = vpop.f32.mrb[0].mxu0
        %v1872 = vadd.f32 %v1749, %v1871
        %v1873 = vpop.f32.mrb[0].mxu0
        %1874 = vmatprep.mubr.bf16.mxu0 0
        %1875 = vmatmul.mubr.bf16.gmra.mrb[0].mxu0 %v1801
        %v1876 = vpop.f32.mrb[0].mxu0
        %v1877 = vadd.f32 %v1749, %v1876
        %v1878 = vpop.f32.mrb[0].mxu0
        %v1879 = vpop.f32.mrb[0].mxu0
        %v1880 = vadd.f32 %v1749, %v1879
        %v1881 = vpop.f32.mrb[0].mxu0
        %1882 = vmatprep.mubr.bf16.mxu0 0
        %1883 = vmatmul.mubr.bf16.gmra.mrb[0].mxu0 %v1804
        %v1884 = vpop.f32.mrb[0].mxu0
        %v1885 = vadd.f32 %v1749, %v1884
        %v1886 = vpop.f32.mrb[0].mxu0
        %v1887 = vpop.f32.mrb[0].mxu0
        %v1888 = vadd.f32 %v1749, %v1887
        %v1889 = vpop.f32.mrb[0].mxu0
        %1890 = vmatprep.mubr.bf16.mxu0 0
        %1891 = vmatmul.mubr.bf16.gmra.mrb[0].mxu0 %v1807
        %v1892 = vpop.f32.mrb[0].mxu0
        %v1893 = vadd.f32 %v1749, %v1892
        %v1894 = vpop.f32.mrb[0].mxu0
        %v1895 = vpop.f32.mrb[0].mxu0
        %v1896 = vadd.f32 %v1749, %v1895
        %v1897 = vpop.f32.mrb[0].mxu0
        %1898 = vmatprep.mubr.bf16.mxu0 0
        %1899 = vmatmul.mubr.bf16.gmra.mrb[0].mxu0 %v1810
        %v1900 = vpop.f32.mrb[0].mxu0
        %v1901 = vadd.f32 %v1749, %v1900
        %v1902 = vpop.f32.mrb[0].mxu0
        %v1903 = vpop.f32.mrb[0].mxu0
        %v1904 = vadd.f32 %v1749, %v1903
        %v1905 = vpop.f32.mrb[0].mxu0
        %1906 = vmatprep.mubr.bf16.mxu0 0
        %1907 = vmatmul.mubr.bf16.gmra.mrb[0].mxu0 %v1813
        %v1908 = vpop.f32.mrb[0].mxu0
        %v1909 = vadd.f32 %v1749, %v1908
        %v1910 = vpop.f32.mrb[0].mxu0
        %v1911 = vpop.f32.mrb[0].mxu0
        %v1912 = vadd.f32 %v1749, %v1911
        %v1913 = vpop.f32.mrb[0].mxu0
        %1914 = vdwg.mxu0
        %v1915 = vmax.f32 %v1853, 0.0
        %v1916 = vmax.f32 %v1856, 0.0
        %v1917 = vmax.f32 %v1861, 0.0
        %v1918 = vmax.f32 %v1864, 0.0
        %v1919 = vmax.f32 %v1869, 0.0
        %v1920 = vmax.f32 %v1872, 0.0
        %v1921 = vmax.f32 %v1877, 0.0
        %v1922 = vmax.f32 %v1880, 0.0
        %v1923 = vmax.f32 %v1885, 0.0
        %v1924 = vmax.f32 %v1888, 0.0
        %v1925 = vmax.f32 %v1893, 0.0
        %v1926 = vmax.f32 %v1896, 0.0
        %v1927 = vmax.f32 %v1901, 0.0
        %v1928 = vmax.f32 %v1904, 0.0
        %v1929 = vmax.f32 %v1909, 0.0
        %v1930 = vmax.f32 %v1912, 0.0
        %v1931 = vpack.c.bf16 %v1916, %v1915
        %v1932 = vpack.c.bf16 %v1918, %v1917
        %v1933 = vpack.c.bf16 %v1920, %v1919
        %v1934 = vpack.c.bf16 %v1922, %v1921
        %v1935 = vpack.c.bf16 %v1924, %v1923
        %v1936 = vpack.c.bf16 %v1926, %v1925
        %v1937 = vpack.c.bf16 %v1928, %v1927
        %v1938 = vpack.c.bf16 %v1930, %v1929
        %s1939 = scalar_lea.vmem %s3, 104
        %v1940 = vld [vmem:[%s1939] sm:$0xf]
        %v1941 = vld [vmem:[%s1939 + $0x4] sm:$0xf]
        %v1942 = vld [vmem:[%s1939 + $0x8] sm:$0xf]
        %v1943 = vld [vmem:[%s1939 + $0xc] sm:$0xf]
        %v1944 = vld [vmem:[%s1939 + $0x10] sm:$0xf]
        %v1945 = vld [vmem:[%s1939 + $0x14] sm:$0xf]
        %v1946 = vld [vmem:[%s1939 + $0x18] sm:$0xf]
        %v1947 = vld [vmem:[%s1939 + $0x1c] sm:$0xf]
        %v1948 = vld [vmem:[%s1939 + $0x20] sm:$0xf]
        %v1949 = vld [vmem:[%s1939 + $0x24] sm:$0xf]
        %v1950 = vld [vmem:[%s1939 + $0x28] sm:$0xf]
        %v1951 = vld [vmem:[%s1939 + $0x2c] sm:$0xf]
        %v1952 = vld [vmem:[%s1939 + $0x30] sm:$0x3]
        %s1953 = scalar_lea.vmem %s4, 2
        %v1954 = vld [vmem:[%s1953] sm:$0x1]
        %v1956 = vlaneseq
        %v1957 = vshrl.u32 %v1956, 7
        %v1958 = vsub.s32 0, %v1957
        %v1959 = vrot.slane %v1954, %v1958
        %v1974 = vunpack.c.l.b16 %v1940
        %v1975 = vunpack.c.l.b16 %v1941
        %v1976 = vunpack.c.l.b16 %v1942
        %v1977 = vunpack.c.l.b16 %v1943
        %v1978 = vunpack.c.l.b16 %v1944
        %v1979 = vunpack.c.l.b16 %v1945
        %v1980 = vunpack.c.l.b16 %v1946
        %v1981 = vunpack.c.l.b16 %v1947
        %v1982 = vunpack.c.l.b16 %v1948
        %v1983 = vunpack.c.l.b16 %v1949
        %v1984 = vunpack.c.l.b16 %v1950
        %v1985 = vunpack.c.l.b16 %v1951
        %v1986 = vunpack.c.l.b16 %v1952
        %v1987 = vpack.c.b16 %v1975, %v1974
        %v1988 = vpack.c.b16 %v1977, %v1976
        %v1989 = vpack.c.b16 %v1979, %v1978
        %v1990 = vpack.c.b16 %v1981, %v1980
        %v1991 = vpack.c.b16 %v1983, %v1982
        %v1992 = vpack.c.b16 %v1985, %v1984
        %v1993 = vpack.c.b16 %v1986, %v1986
        %v2001 = vsel %vm844, %v1931, 0
        %v2004 = vsel %vm844, %v1932, 0
        %v2007 = vsel %vm844, %v1933, 0
        %v2010 = vsel %vm844, %v1934, 0
        %v2013 = vsel %vm844, %v1935, 0
        %v2016 = vsel %vm844, %v1936, 0
        %v2019 = vsel %vm844, %v1937, 0
        %v2022 = vsel %vm844, %v1938, 0
        %v2025 = vsel %vm869, %v1993, 0
        %2027 = vmatprep.subr.bf16.mxu0 0
        %2028 = vmatpush1.bf16.msra.mxu0 %v1987
        %2029 = vmatprep.subr.bf16.mxu0 0
        %2030 = vmatpush1.bf16.msra.mxu0 %v1988
        %2031 = vmatprep.subr.bf16.mxu0 0
        %2032 = vmatpush1.bf16.msra.mxu0 %v1989
        %2033 = vmatprep.subr.bf16.mxu0 0
        %2034 = vmatpush1.bf16.msra.mxu0 %v1990
        %2035 = vmatprep.subr.bf16.mxu0 0
        %2036 = vmatpush1.bf16.msra.mxu0 %v1991
        %2037 = vmatprep.subr.bf16.mxu0 0
        %2038 = vmatpush1.bf16.msra.mxu0 %v1992
        %2039 = vmatprep.subr.bf16.mxu0 0
        %2040 = vmatpush1.bf16.msra.mxu0 %v2025
        %2041 = vmatprep.subr.bf16.mxu0 0
        %2042 = vmatpush1.bf16.msra.mxu0 0
        %2043 = vmatprep.subr.bf16.mxu0 0
        %2044 = vmatpush1.bf16.msra.mxu0 0
        %2045 = vmatprep.subr.bf16.mxu0 0
        %2046 = vmatpush1.bf16.msra.mxu0 0
        %2047 = vmatprep.subr.bf16.mxu0 0
        %2048 = vmatpush1.bf16.msra.mxu0 0
        %2049 = vmatprep.subr.bf16.mxu0 0
        %2050 = vmatpush1.bf16.msra.mxu0 0
        %2051 = vmatprep.subr.bf16.mxu0 0
        %2052 = vmatpush1.bf16.msra.mxu0 0
        %2053 = vmatprep.subr.bf16.mxu0 0
        %2054 = vmatpush1.bf16.msra.mxu0 0
        %2055 = vmatprep.subr.bf16.mxu0 0
        %2056 = vmatpush1.bf16.msra.mxu0 0
        %2057 = vmatprep.subr.bf16.mxu0 0
        %2058 = vmatpush1.bf16.msra.mxu0 0
        %2059 = vmatprep.mubr.bf16.mxu0 0
        %2060 = vmatmul.mubr.bf16.gmra.mrb[0].mxu0 %v2001
        %v2061 = vpop.f32.mrb[0].mxu0
        %v2062 = vadd.f32 %v1959, %v2061
        %v2063 = vpop.f32.mrb[0].mxu0
        %v2064 = vpop.f32.mrb[0].mxu0
        %v2065 = vadd.f32 %v1959, %v2064
        %v2066 = vpop.f32.mrb[0].mxu0
        %2067 = vmatprep.mubr.bf16.mxu0 0
        %2068 = vmatmul.mubr.bf16.gmra.mrb[0].mxu0 %v2004
        %v2069 = vpop.f32.mrb[0].mxu0
        %v2070 = vadd.f32 %v1959, %v2069
        %v2071 = vpop.f32.mrb[0].mxu0
        %v2072 = vpop.f32.mrb[0].mxu0
        %v2073 = vadd.f32 %v1959, %v2072
        %v2074 = vpop.f32.mrb[0].mxu0
        %2075 = vmatprep.mubr.bf16.mxu0 0
        %2076 = vmatmul.mubr.bf16.gmra.mrb[0].mxu0 %v2007
        %v2077 = vpop.f32.mrb[0].mxu0
        %v2078 = vadd.f32 %v1959, %v2077
        %v2079 = vpop.f32.mrb[0].mxu0
        %v2080 = vpop.f32.mrb[0].mxu0
        %v2081 = vadd.f32 %v1959, %v2080
        %v2082 = vpop.f32.mrb[0].mxu0
        %2083 = vmatprep.mubr.bf16.mxu0 0
        %2084 = vmatmul.mubr.bf16.gmra.mrb[0].mxu0 %v2010
        %v2085 = vpop.f32.mrb[0].mxu0
        %v2086 = vadd.f32 %v1959, %v2085
        %v2087 = vpop.f32.mrb[0].mxu0
        %v2088 = vpop.f32.mrb[0].mxu0
        %v2089 = vadd.f32 %v1959, %v2088
        %v2090 = vpop.f32.mrb[0].mxu0
        %2091 = vmatprep.mubr.bf16.mxu0 0
        %2092 = vmatmul.mubr.bf16.gmra.mrb[0].mxu0 %v2013
        %v2093 = vpop.f32.mrb[0].mxu0
        %v2094 = vadd.f32 %v1959, %v2093
        %v2095 = vpop.f32.mrb[0].mxu0
        %v2096 = vpop.f32.mrb[0].mxu0
        %v2097 = vadd.f32 %v1959, %v2096
        %v2098 = vpop.f32.mrb[0].mxu0
        %2099 = vmatprep.mubr.bf16.mxu0 0
        %2100 = vmatmul.mubr.bf16.gmra.mrb[0].mxu0 %v2016
        %v2101 = vpop.f32.mrb[0].mxu0
        %v2102 = vadd.f32 %v1959, %v2101
        %v2103 = vpop.f32.mrb[0].mxu0
        %v2104 = vpop.f32.mrb[0].mxu0
        %v2105 = vadd.f32 %v1959, %v2104
        %v2106 = vpop.f32.mrb[0].mxu0
        %2107 = vmatprep.mubr.bf16.mxu0 0
        %2108 = vmatmul.mubr.bf16.gmra.mrb[0].mxu0 %v2019
        %v2109 = vpop.f32.mrb[0].mxu0
        %v2110 = vadd.f32 %v1959, %v2109
        %v2111 = vpop.f32.mrb[0].mxu0
        %v2112 = vpop.f32.mrb[0].mxu0
        %v2113 = vadd.f32 %v1959, %v2112
        %v2114 = vpop.f32.mrb[0].mxu0
        %2115 = vmatprep.mubr.bf16.mxu0 0
        %2116 = vmatmul.mubr.bf16.gmra.mrb[0].mxu0 %v2022
        %v2117 = vpop.f32.mrb[0].mxu0
        %v2118 = vadd.f32 %v1959, %v2117
        %v2119 = vpop.f32.mrb[0].mxu0
        %v2120 = vpop.f32.mrb[0].mxu0
        %v2121 = vadd.f32 %v1959, %v2120
        %v2122 = vpop.f32.mrb[0].mxu0
        %2123 = vdwg.mxu0
        %v2124 = vmax.f32 %v2062, 0.0
        %v2125 = vmax.f32 %v2065, 0.0
        %v2126 = vmax.f32 %v2070, 0.0
        %v2127 = vmax.f32 %v2073, 0.0
        %v2128 = vmax.f32 %v2078, 0.0
        %v2129 = vmax.f32 %v2081, 0.0
        %v2130 = vmax.f32 %v2086, 0.0
        %v2131 = vmax.f32 %v2089, 0.0
        %v2132 = vmax.f32 %v2094, 0.0
        %v2133 = vmax.f32 %v2097, 0.0
        %v2134 = vmax.f32 %v2102, 0.0
        %v2135 = vmax.f32 %v2105, 0.0
        %v2136 = vmax.f32 %v2110, 0.0
        %v2137 = vmax.f32 %v2113, 0.0
        %v2138 = vmax.f32 %v2118, 0.0
        %v2139 = vmax.f32 %v2121, 0.0
        %v2140 = vpack.c.bf16 %v2125, %v2124
        %v2141 = vpack.c.bf16 %v2127, %v2126
        %v2142 = vpack.c.bf16 %v2129, %v2128
        %v2143 = vpack.c.bf16 %v2131, %v2130
        %v2144 = vpack.c.bf16 %v2133, %v2132
        %v2145 = vpack.c.bf16 %v2135, %v2134
        %v2146 = vpack.c.bf16 %v2137, %v2136
        %v2147 = vpack.c.bf16 %v2139, %v2138
        %s2148 = scalar_lea.vmem %s5, 24
        %v2149 = vld [vmem:[%s2148] sm:$0xf]
        %v2150 = vld [vmem:[%s2148 + $0x4] sm:$0xf]
        %v2151 = vld [vmem:[%s2148 + $0x8] sm:$0x3]
        %v2155 = vunpack.c.l.b16 %v2149
        %v2156 = vunpack.c.l.b16 %v2150
        %v2157 = vunpack.c.l.b16 %v2151
        %v2158 = vpack.c.b16 %v2156, %v2155
        %v2159 = vpack.c.b16 %v2157, %v2157
        %v2162 = vsel %vm1006, %v2140, 0
        %v2165 = vsel %vm1006, %v2141, 0
        %v2168 = vsel %vm1006, %v2142, 0
        %v2171 = vsel %vm1006, %v2143, 0
        %v2174 = vsel %vm1006, %v2144, 0
        %v2177 = vsel %vm1006, %v2145, 0
        %v2180 = vsel %vm1006, %v2146, 0
        %v2183 = vsel %vm1006, %v2147, 0
        %v2186 = vsel %vm869, %v2159, 0
        %2188 = vmatprep.subr.bf16.mxu0 0
        %2189 = vmatpush1.bf16.msra.mxu0 %v2158
        %2190 = vmatprep.subr.bf16.mxu0 0
        %2191 = vmatpush1.bf16.msra.mxu0 %v2186
        %2192 = vmatprep.subr.bf16.mxu0 0
        %2193 = vmatpush1.bf16.msra.mxu0 0
        %2194 = vmatprep.subr.bf16.mxu0 0
        %2195 = vmatpush1.bf16.msra.mxu0 0
        %2196 = vmatprep.subr.bf16.mxu0 0
        %2197 = vmatpush1.bf16.msra.mxu0 0
        %2198 = vmatprep.subr.bf16.mxu0 0
        %2199 = vmatpush1.bf16.msra.mxu0 0
        %2200 = vmatprep.subr.bf16.mxu0 0
        %2201 = vmatpush1.bf16.msra.mxu0 0
        %2202 = vmatprep.subr.bf16.mxu0 0
        %2203 = vmatpush1.bf16.msra.mxu0 0
        %2204 = vmatprep.subr.bf16.mxu0 0
        %2205 = vmatpush1.bf16.msra.mxu0 0
        %2206 = vmatprep.subr.bf16.mxu0 0
        %2207 = vmatpush1.bf16.msra.mxu0 0
        %2208 = vmatprep.subr.bf16.mxu0 0
        %2209 = vmatpush1.bf16.msra.mxu0 0
        %2210 = vmatprep.subr.bf16.mxu0 0
        %2211 = vmatpush1.bf16.msra.mxu0 0
        %2212 = vmatprep.subr.bf16.mxu0 0
        %2213 = vmatpush1.bf16.msra.mxu0 0
        %2214 = vmatprep.subr.bf16.mxu0 0
        %2215 = vmatpush1.bf16.msra.mxu0 0
        %2216 = vmatprep.subr.bf16.mxu0 0
        %2217 = vmatpush1.bf16.msra.mxu0 0
        %2218 = vmatprep.subr.bf16.mxu0 0
        %2219 = vmatpush1.bf16.msra.mxu0 0
        %2220 = vmatprep.mubr.bf16.mxu0 0
        %2221 = vmatmul.mubr.bf16.gmra.mrb[0].mxu0 %v2162
        %v2222 = vpop.f32.mrb[0].mxu0
        %v2223 = vadd.f32 0.0, %v2222
        %v2224 = vpop.f32.mrb[0].mxu0
        %v2225 = vpop.f32.mrb[0].mxu0
        %v2226 = vadd.f32 0.0, %v2225
        %v2227 = vpop.f32.mrb[0].mxu0
        %2228 = vmatprep.mubr.bf16.mxu0 0
        %2229 = vmatmul.mubr.bf16.gmra.mrb[0].mxu0 %v2165
        %v2230 = vpop.f32.mrb[0].mxu0
        %v2231 = vadd.f32 0.0, %v2230
        %v2232 = vpop.f32.mrb[0].mxu0
        %v2233 = vpop.f32.mrb[0].mxu0
        %v2234 = vadd.f32 0.0, %v2233
        %v2235 = vpop.f32.mrb[0].mxu0
        %2236 = vmatprep.mubr.bf16.mxu0 0
        %2237 = vmatmul.mubr.bf16.gmra.mrb[0].mxu0 %v2168
        %v2238 = vpop.f32.mrb[0].mxu0
        %v2239 = vadd.f32 0.0, %v2238
        %v2240 = vpop.f32.mrb[0].mxu0
        %v2241 = vpop.f32.mrb[0].mxu0
        %v2242 = vadd.f32 0.0, %v2241
        %v2243 = vpop.f32.mrb[0].mxu0
        %2244 = vmatprep.mubr.bf16.mxu0 0
        %2245 = vmatmul.mubr.bf16.gmra.mrb[0].mxu0 %v2171
        %v2246 = vpop.f32.mrb[0].mxu0
        %v2247 = vadd.f32 0.0, %v2246
        %v2248 = vpop.f32.mrb[0].mxu0
        %v2249 = vpop.f32.mrb[0].mxu0
        %v2250 = vadd.f32 0.0, %v2249
        %v2251 = vpop.f32.mrb[0].mxu0
        %2252 = vmatprep.mubr.bf16.mxu0 0
        %2253 = vmatmul.mubr.bf16.gmra.mrb[0].mxu0 %v2174
        %v2254 = vpop.f32.mrb[0].mxu0
        %v2255 = vadd.f32 0.0, %v2254
        %v2256 = vpop.f32.mrb[0].mxu0
        %v2257 = vpop.f32.mrb[0].mxu0
        %v2258 = vadd.f32 0.0, %v2257
        %v2259 = vpop.f32.mrb[0].mxu0
        %2260 = vmatprep.mubr.bf16.mxu0 0
        %2261 = vmatmul.mubr.bf16.gmra.mrb[0].mxu0 %v2177
        %v2262 = vpop.f32.mrb[0].mxu0
        %v2263 = vadd.f32 0.0, %v2262
        %v2264 = vpop.f32.mrb[0].mxu0
        %v2265 = vpop.f32.mrb[0].mxu0
        %v2266 = vadd.f32 0.0, %v2265
        %v2267 = vpop.f32.mrb[0].mxu0
        %2268 = vmatprep.mubr.bf16.mxu0 0
        %2269 = vmatmul.mubr.bf16.gmra.mrb[0].mxu0 %v2180
        %v2270 = vpop.f32.mrb[0].mxu0
        %v2271 = vadd.f32 0.0, %v2270
        %v2272 = vpop.f32.mrb[0].mxu0
        %v2273 = vpop.f32.mrb[0].mxu0
        %v2274 = vadd.f32 0.0, %v2273
        %v2275 = vpop.f32.mrb[0].mxu0
        %2276 = vmatprep.mubr.bf16.mxu0 0
        %2277 = vmatmul.mubr.bf16.gmra.mrb[0].mxu0 %v2183
        %v2278 = vpop.f32.mrb[0].mxu0
        %v2279 = vadd.f32 0.0, %v2278
        %v2280 = vpop.f32.mrb[0].mxu0
        %v2281 = vpop.f32.mrb[0].mxu0
        %v2282 = vadd.f32 0.0, %v2281
        %v2283 = vpop.f32.mrb[0].mxu0
        %2284 = vdwg.mxu0
        %v2285 = vadd.f32 %v1708, %v2223
        %v2286 = vadd.f32 %v1709, %v2226
        %v2287 = vadd.f32 %v1710, %v2231
        %v2288 = vadd.f32 %v1711, %v2234
        %v2289 = vadd.f32 %v1712, %v2239
        %v2290 = vadd.f32 %v1713, %v2242
        %v2291 = vadd.f32 %v1714, %v2247
        %v2292 = vadd.f32 %v1715, %v2250
        %v2293 = vadd.f32 %v1716, %v2255
        %v2294 = vadd.f32 %v1717, %v2258
        %v2295 = vadd.f32 %v1718, %v2263
        %v2296 = vadd.f32 %v1719, %v2266
        %v2297 = vadd.f32 %v1720, %v2271
        %v2298 = vadd.f32 %v1721, %v2274
        %v2299 = vadd.f32 %v1722, %v2279
        %v2300 = vadd.f32 %v1723, %v2282
        %v2301 = vmax.f32 %v2285, 0.0
        %v2302 = vmax.f32 %v2286, 0.0
        %v2303 = vmax.f32 %v2287, 0.0
        %v2304 = vmax.f32 %v2288, 0.0
        %v2305 = vmax.f32 %v2289, 0.0
        %v2306 = vmax.f32 %v2290, 0.0
        %v2307 = vmax.f32 %v2291, 0.0
        %v2308 = vmax.f32 %v2292, 0.0
        %v2309 = vmax.f32 %v2293, 0.0
        %v2310 = vmax.f32 %v2294, 0.0
        %v2311 = vmax.f32 %v2295, 0.0
        %v2312 = vmax.f32 %v2296, 0.0
        %v2313 = vmax.f32 %v2297, 0.0
        %v2314 = vmax.f32 %v2298, 0.0
        %v2315 = vmax.f32 %v2299, 0.0
        %v2316 = vmax.f32 %v2300, 0.0
        %v2317 = vpack.c.bf16 %v2302, %v2301
        %v2318 = vpack.c.bf16 %v2304, %v2303
        %v2319 = vpack.c.bf16 %v2306, %v2305
        %v2320 = vpack.c.bf16 %v2308, %v2307
        %v2321 = vpack.c.bf16 %v2310, %v2309
        %v2322 = vpack.c.bf16 %v2312, %v2311
        %v2323 = vpack.c.bf16 %v2314, %v2313
        %v2324 = vpack.c.bf16 %v2316, %v2315
        %v2325 = vld [vmem:[%s7] sm:$0xf]
        %v2326 = vld [vmem:[%s7 + $0x4] sm:$0xf]
        %v2327 = vld [vmem:[%s7 + $0x8] sm:$0xf]
        %v2328 = vld [vmem:[%s7 + $0xc] sm:$0xf]
        %v2329 = vld [vmem:[%s7 + $0x10] sm:$0xf]
        %v2330 = vld [vmem:[%s7 + $0x14] sm:$0xf]
        %v2331 = vld [vmem:[%s7 + $0x18] sm:$0xf]
        %v2332 = vld [vmem:[%s7 + $0x1c] sm:$0xf]
        %v2333 = vld [vmem:[%s7 + $0x20] sm:$0xf]
        %v2334 = vld [vmem:[%s7 + $0x24] sm:$0xf]
        %v2335 = vld [vmem:[%s7 + $0x28] sm:$0xf]
        %v2336 = vld [vmem:[%s7 + $0x2c] sm:$0xf]
        %v2337 = vld [vmem:[%s7 + $0x30] sm:$0x3]
        %v2338 = vld [vmem:[%s8] sm:$0x1]
        %v2340 = vlaneseq
        %v2341 = vshrl.u32 %v2340, 7
        %v2342 = vsub.s32 0, %v2341
        %v2343 = vrot.slane %v2338, %v2342
        %v2358 = vunpack.c.l.b16 %v2325
        %v2359 = vunpack.c.l.b16 %v2326
        %v2360 = vunpack.c.l.b16 %v2327
        %v2361 = vunpack.c.l.b16 %v2328
        %v2362 = vunpack.c.l.b16 %v2329
        %v2363 = vunpack.c.l.b16 %v2330
        %v2364 = vunpack.c.l.b16 %v2331
        %v2365 = vunpack.c.l.b16 %v2332
        %v2366 = vunpack.c.l.b16 %v2333
        %v2367 = vunpack.c.l.b16 %v2334
        %v2368 = vunpack.c.l.b16 %v2335
        %v2369 = vunpack.c.l.b16 %v2336
        %v2370 = vunpack.c.l.b16 %v2337
        %v2371 = vpack.c.b16 %v2359, %v2358
        %v2372 = vpack.c.b16 %v2361, %v2360
        %v2373 = vpack.c.b16 %v2363, %v2362
        %v2374 = vpack.c.b16 %v2365, %v2364
        %v2375 = vpack.c.b16 %v2367, %v2366
        %v2376 = vpack.c.b16 %v2369, %v2368
        %v2377 = vpack.c.b16 %v2370, %v2370
        %v2385 = vsel %vm844, %v2317, 0
        %v2388 = vsel %vm844, %v2318, 0
        %v2391 = vsel %vm844, %v2319, 0
        %v2394 = vsel %vm844, %v2320, 0
        %v2397 = vsel %vm844, %v2321, 0
        %v2400 = vsel %vm844, %v2322, 0
        %v2403 = vsel %vm844, %v2323, 0
        %v2406 = vsel %vm844, %v2324, 0
        %v2409 = vsel %vm869, %v2377, 0
        %2411 = vmatprep.subr.bf16.mxu0 0
        %2412 = vmatpush1.bf16.msra.mxu0 %v2371
        %2413 = vmatprep.subr.bf16.mxu0 0
        %2414 = vmatpush1.bf16.msra.mxu0 %v2372
        %2415 = vmatprep.subr.bf16.mxu0 0
        %2416 = vmatpush1.bf16.msra.mxu0 %v2373
        %2417 = vmatprep.subr.bf16.mxu0 0
        %2418 = vmatpush1.bf16.msra.mxu0 %v2374
        %2419 = vmatprep.subr.bf16.mxu0 0
        %2420 = vmatpush1.bf16.msra.mxu0 %v2375
        %2421 = vmatprep.subr.bf16.mxu0 0
        %2422 = vmatpush1.bf16.msra.mxu0 %v2376
        %2423 = vmatprep.subr.bf16.mxu0 0
        %2424 = vmatpush1.bf16.msra.mxu0 %v2409
        %2425 = vmatprep.subr.bf16.mxu0 0
        %2426 = vmatpush1.bf16.msra.mxu0 0
        %2427 = vmatprep.subr.bf16.mxu0 0
        %2428 = vmatpush1.bf16.msra.mxu0 0
        %2429 = vmatprep.subr.bf16.mxu0 0
        %2430 = vmatpush1.bf16.msra.mxu0 0
        %2431 = vmatprep.subr.bf16.mxu0 0
        %2432 = vmatpush1.bf16.msra.mxu0 0
        %2433 = vmatprep.subr.bf16.mxu0 0
        %2434 = vmatpush1.bf16.msra.mxu0 0
        %2435 = vmatprep.subr.bf16.mxu0 0
        %2436 = vmatpush1.bf16.msra.mxu0 0
        %2437 = vmatprep.subr.bf16.mxu0 0
        %2438 = vmatpush1.bf16.msra.mxu0 0
        %2439 = vmatprep.subr.bf16.mxu0 0
        %2440 = vmatpush1.bf16.msra.mxu0 0
        %2441 = vmatprep.subr.bf16.mxu0 0
        %2442 = vmatpush1.bf16.msra.mxu0 0
        %2443 = vmatprep.mubr.bf16.mxu0 0
        %2444 = vmatmul.mubr.bf16.gmra.mrb[0].mxu0 %v2385
        %v2445 = vpop.f32.mrb[0].mxu0
        %v2446 = vadd.f32 %v2343, %v2445
        %v2447 = vpop.f32.mrb[0].mxu0
        %v2448 = vpop.f32.mrb[0].mxu0
        %v2449 = vadd.f32 %v2343, %v2448
        %v2450 = vpop.f32.mrb[0].mxu0
        %2451 = vmatprep.mubr.bf16.mxu0 0
        %2452 = vmatmul.mubr.bf16.gmra.mrb[0].mxu0 %v2388
        %v2453 = vpop.f32.mrb[0].mxu0
        %v2454 = vadd.f32 %v2343, %v2453
        %v2455 = vpop.f32.mrb[0].mxu0
        %v2456 = vpop.f32.mrb[0].mxu0
        %v2457 = vadd.f32 %v2343, %v2456
        %v2458 = vpop.f32.mrb[0].mxu0
        %2459 = vmatprep.mubr.bf16.mxu0 0
        %2460 = vmatmul.mubr.bf16.gmra.mrb[0].mxu0 %v2391
        %v2461 = vpop.f32.mrb[0].mxu0
        %v2462 = vadd.f32 %v2343, %v2461
        %v2463 = vpop.f32.mrb[0].mxu0
        %v2464 = vpop.f32.mrb[0].mxu0
        %v2465 = vadd.f32 %v2343, %v2464
        %v2466 = vpop.f32.mrb[0].mxu0
        %2467 = vmatprep.mubr.bf16.mxu0 0
        %2468 = vmatmul.mubr.bf16.gmra.mrb[0].mxu0 %v2394
        %v2469 = vpop.f32.mrb[0].mxu0
        %v2470 = vadd.f32 %v2343, %v2469
        %v2471 = vpop.f32.mrb[0].mxu0
        %v2472 = vpop.f32.mrb[0].mxu0
        %v2473 = vadd.f32 %v2343, %v2472
        %v2474 = vpop.f32.mrb[0].mxu0
        %2475 = vmatprep.mubr.bf16.mxu0 0
        %2476 = vmatmul.mubr.bf16.gmra.mrb[0].mxu0 %v2397
        %v2477 = vpop.f32.mrb[0].mxu0
        %v2478 = vadd.f32 %v2343, %v2477
        %v2479 = vpop.f32.mrb[0].mxu0
        %v2480 = vpop.f32.mrb[0].mxu0
        %v2481 = vadd.f32 %v2343, %v2480
        %v2482 = vpop.f32.mrb[0].mxu0
        %2483 = vmatprep.mubr.bf16.mxu0 0
        %2484 = vmatmul.mubr.bf16.gmra.mrb[0].mxu0 %v2400
        %v2485 = vpop.f32.mrb[0].mxu0
        %v2486 = vadd.f32 %v2343, %v2485
        %v2487 = vpop.f32.mrb[0].mxu0
        %v2488 = vpop.f32.mrb[0].mxu0
        %v2489 = vadd.f32 %v2343, %v2488
        %v2490 = vpop.f32.mrb[0].mxu0
        %2491 = vmatprep.mubr.bf16.mxu0 0
        %2492 = vmatmul.mubr.bf16.gmra.mrb[0].mxu0 %v2403
        %v2493 = vpop.f32.mrb[0].mxu0
        %v2494 = vadd.f32 %v2343, %v2493
        %v2495 = vpop.f32.mrb[0].mxu0
        %v2496 = vpop.f32.mrb[0].mxu0
        %v2497 = vadd.f32 %v2343, %v2496
        %v2498 = vpop.f32.mrb[0].mxu0
        %2499 = vmatprep.mubr.bf16.mxu0 0
        %2500 = vmatmul.mubr.bf16.gmra.mrb[0].mxu0 %v2406
        %v2501 = vpop.f32.mrb[0].mxu0
        %v2502 = vadd.f32 %v2343, %v2501
        %v2503 = vpop.f32.mrb[0].mxu0
        %v2504 = vpop.f32.mrb[0].mxu0
        %v2505 = vadd.f32 %v2343, %v2504
        %v2506 = vpop.f32.mrb[0].mxu0
        %2507 = vdwg.mxu0
        %2508 = vmax.xlane.f32.xlu0 %v2446
        %v2509 = vpop.xlane.xlu0 %2508
        %2510 = vmax.xlane.f32.xlu0 %v2449
        %v2511 = vpop.xlane.xlu0 %2510
        %2512 = vmax.xlane.f32.xlu0 %v2454
        %v2513 = vpop.xlane.xlu0 %2512
        %2514 = vmax.xlane.f32.xlu0 %v2457
        %v2515 = vpop.xlane.xlu0 %2514
        %2516 = vmax.xlane.f32.xlu0 %v2462
        %v2517 = vpop.xlane.xlu0 %2516
        %2518 = vmax.xlane.f32.xlu0 %v2465
        %v2519 = vpop.xlane.xlu0 %2518
        %2520 = vmax.xlane.f32.xlu0 %v2470
        %v2521 = vpop.xlane.xlu0 %2520
        %2522 = vmax.xlane.f32.xlu0 %v2473
        %v2523 = vpop.xlane.xlu0 %2522
        %2524 = vmax.xlane.f32.xlu0 %v2478
        %v2525 = vpop.xlane.xlu0 %2524
        %2526 = vmax.xlane.f32.xlu0 %v2481
        %v2527 = vpop.xlane.xlu0 %2526
        %2528 = vmax.xlane.f32.xlu0 %v2486
        %v2529 = vpop.xlane.xlu0 %2528
        %2530 = vmax.xlane.f32.xlu0 %v2489
        %v2531 = vpop.xlane.xlu0 %2530
        %2532 = vmax.xlane.f32.xlu0 %v2494
        %v2533 = vpop.xlane.xlu0 %2532
        %2534 = vmax.xlane.f32.xlu0 %v2497
        %v2535 = vpop.xlane.xlu0 %2534
        %2536 = vmax.xlane.f32.xlu0 %v2502
        %v2537 = vpop.xlane.xlu0 %2536
        %2538 = vmax.xlane.f32.xlu0 %v2505
        %v2539 = vpop.xlane.xlu0 %2538
        %v2540 = vsub.f32 %v2446, %v2509
        %v2541 = vsub.f32 %v2449, %v2511
        %v2542 = vsub.f32 %v2454, %v2513
        %v2543 = vsub.f32 %v2457, %v2515
        %v2544 = vsub.f32 %v2462, %v2517
        %v2545 = vsub.f32 %v2465, %v2519
        %v2546 = vsub.f32 %v2470, %v2521
        %v2547 = vsub.f32 %v2473, %v2523
        %v2548 = vsub.f32 %v2478, %v2525
        %v2549 = vsub.f32 %v2481, %v2527
        %v2550 = vsub.f32 %v2486, %v2529
        %v2551 = vsub.f32 %v2489, %v2531
        %v2552 = vsub.f32 %v2494, %v2533
        %v2553 = vsub.f32 %v2497, %v2535
        %v2554 = vsub.f32 %v2502, %v2537
        %v2555 = vsub.f32 %v2505, %v2539
        %v2556 = vmul.f32 %v2540, 1.442695
        %v2557 = vpow.pop %v2556
        %v2558 = vmul.f32 %v2541, 1.442695
        %v2559 = vpow.pop %v2558
        %v2560 = vmul.f32 %v2542, 1.442695
        %v2561 = vpow.pop %v2560
        %v2562 = vmul.f32 %v2543, 1.442695
        %v2563 = vpow.pop %v2562
        %v2564 = vmul.f32 %v2544, 1.442695
        %v2565 = vpow.pop %v2564
        %v2566 = vmul.f32 %v2545, 1.442695
        %v2567 = vpow.pop %v2566
        %v2568 = vmul.f32 %v2546, 1.442695
        %v2569 = vpow.pop %v2568
        %v2570 = vmul.f32 %v2547, 1.442695
        %v2571 = vpow.pop %v2570
        %v2572 = vmul.f32 %v2548, 1.442695
        %v2573 = vpow.pop %v2572
        %v2574 = vmul.f32 %v2549, 1.442695
        %v2575 = vpow.pop %v2574
        %v2576 = vmul.f32 %v2550, 1.442695
        %v2577 = vpow.pop %v2576
        %v2578 = vmul.f32 %v2551, 1.442695
        %v2579 = vpow.pop %v2578
        %v2580 = vmul.f32 %v2552, 1.442695
        %v2581 = vpow.pop %v2580
        %v2582 = vmul.f32 %v2553, 1.442695
        %v2583 = vpow.pop %v2582
        %v2584 = vmul.f32 %v2554, 1.442695
        %v2585 = vpow.pop %v2584
        %v2586 = vmul.f32 %v2555, 1.442695
        %v2587 = vpow.pop %v2586
        %2588 = vadd.xlane.f32.xlu0 %v2557
        %v2589 = vpop.xlane.xlu0 %2588
        %2590 = vadd.xlane.f32.xlu0 %v2559
        %v2591 = vpop.xlane.xlu0 %2590
        %2592 = vadd.xlane.f32.xlu0 %v2561
        %v2593 = vpop.xlane.xlu0 %2592
        %2594 = vadd.xlane.f32.xlu0 %v2563
        %v2595 = vpop.xlane.xlu0 %2594
        %2596 = vadd.xlane.f32.xlu0 %v2565
        %v2597 = vpop.xlane.xlu0 %2596
        %2598 = vadd.xlane.f32.xlu0 %v2567
        %v2599 = vpop.xlane.xlu0 %2598
        %2600 = vadd.xlane.f32.xlu0 %v2569
        %v2601 = vpop.xlane.xlu0 %2600
        %2602 = vadd.xlane.f32.xlu0 %v2571
        %v2603 = vpop.xlane.xlu0 %2602
        %2604 = vadd.xlane.f32.xlu0 %v2573
        %v2605 = vpop.xlane.xlu0 %2604
        %2606 = vadd.xlane.f32.xlu0 %v2575
        %v2607 = vpop.xlane.xlu0 %2606
        %2608 = vadd.xlane.f32.xlu0 %v2577
        %v2609 = vpop.xlane.xlu0 %2608
        %2610 = vadd.xlane.f32.xlu0 %v2579
        %v2611 = vpop.xlane.xlu0 %2610
        %2612 = vadd.xlane.f32.xlu0 %v2581
        %v2613 = vpop.xlane.xlu0 %2612
        %2614 = vadd.xlane.f32.xlu0 %v2583
        %v2615 = vpop.xlane.xlu0 %2614
        %2616 = vadd.xlane.f32.xlu0 %v2585
        %v2617 = vpop.xlane.xlu0 %2616
        %2618 = vadd.xlane.f32.xlu0 %v2587
        %v2619 = vpop.xlane.xlu0 %2618
        %v2620 = vlog2.pop %v2589
        %v2621 = vmul.f32 %v2620, 0.6931472
        %v2622 = vlog2.pop %v2591
        %v2623 = vmul.f32 %v2622, 0.6931472
        %v2624 = vlog2.pop %v2593
        %v2625 = vmul.f32 %v2624, 0.6931472
        %v2626 = vlog2.pop %v2595
        %v2627 = vmul.f32 %v2626, 0.6931472
        %v2628 = vlog2.pop %v2597
        %v2629 = vmul.f32 %v2628, 0.6931472
        %v2630 = vlog2.pop %v2599
        %v2631 = vmul.f32 %v2630, 0.6931472
        %v2632 = vlog2.pop %v2601
        %v2633 = vmul.f32 %v2632, 0.6931472
        %v2634 = vlog2.pop %v2603
        %v2635 = vmul.f32 %v2634, 0.6931472
        %v2636 = vlog2.pop %v2605
        %v2637 = vmul.f32 %v2636, 0.6931472
        %v2638 = vlog2.pop %v2607
        %v2639 = vmul.f32 %v2638, 0.6931472
        %v2640 = vlog2.pop %v2609
        %v2641 = vmul.f32 %v2640, 0.6931472
        %v2642 = vlog2.pop %v2611
        %v2643 = vmul.f32 %v2642, 0.6931472
        %v2644 = vlog2.pop %v2613
        %v2645 = vmul.f32 %v2644, 0.6931472
        %v2646 = vlog2.pop %v2615
        %v2647 = vmul.f32 %v2646, 0.6931472
        %v2648 = vlog2.pop %v2617
        %v2649 = vmul.f32 %v2648, 0.6931472
        %v2650 = vlog2.pop %v2619
        %v2651 = vmul.f32 %v2650, 0.6931472
        %v2652 = vsub.f32 %v2540, %v2621
        %v2653 = vsub.f32 %v2541, %v2623
        %v2654 = vsub.f32 %v2542, %v2625
        %v2655 = vsub.f32 %v2543, %v2627
        %v2656 = vsub.f32 %v2544, %v2629
        %v2657 = vsub.f32 %v2545, %v2631
        %v2658 = vsub.f32 %v2546, %v2633
        %v2659 = vsub.f32 %v2547, %v2635
        %v2660 = vsub.f32 %v2548, %v2637
        %v2661 = vsub.f32 %v2549, %v2639
        %v2662 = vsub.f32 %v2550, %v2641
        %v2663 = vsub.f32 %v2551, %v2643
        %v2664 = vsub.f32 %v2552, %v2645
        %v2665 = vsub.f32 %v2553, %v2647
        %v2666 = vsub.f32 %v2554, %v2649
        %v2667 = vsub.f32 %v2555, %v2651
        %2668 = vst [vmem:[%s560] sm:$0xff] %v2652
        %2669 = vst [vmem:[%s560 + $0x8] sm:$0xff] %v2653
        %2670 = vst [vmem:[%s560 + $0x10] sm:$0xff] %v2654
        %2671 = vst [vmem:[%s560 + $0x18] sm:$0xff] %v2655
        %2672 = vst [vmem:[%s560 + $0x20] sm:$0xff] %v2656
        %2673 = vst [vmem:[%s560 + $0x28] sm:$0xff] %v2657
        %2674 = vst [vmem:[%s560 + $0x30] sm:$0xff] %v2658
        %2675 = vst [vmem:[%s560 + $0x38] sm:$0xff] %v2659
        %2676 = vst [vmem:[%s560 + $0x40] sm:$0xff] %v2660
        %2677 = vst [vmem:[%s560 + $0x48] sm:$0xff] %v2661
        %2678 = vst [vmem:[%s560 + $0x50] sm:$0xff] %v2662
        %2679 = vst [vmem:[%s560 + $0x58] sm:$0xff] %v2663
        %2680 = vst [vmem:[%s560 + $0x60] sm:$0xff] %v2664
        %2681 = vst [vmem:[%s560 + $0x68] sm:$0xff] %v2665
        %2682 = vst [vmem:[%s560 + $0x70] sm:$0xff] %v2666
        %2683 = vst [vmem:[%s560 + $0x78] sm:$0xff] %v2667
        %s2684 = sand.u32 %s225, 1
        %s2685 = scalar_lea.sflag [#allocation4], %s2684
        %s2686 = sand.u32 %s225, 1
        %s2687 = smul.addr %s2686, 128
        %s2688 = scalar_lea.vmem [#allocation3], %s2687
        // Predicated region
        $region98: #{tpu_custom_call.1} parent=92 // pred_check
          %p2689 = pneg %p235
        $region99: #{tpu_custom_call.1} parent=92 // pred_check_branch
          %2691 = sbr.rel (%p2689) target = $region101
        $region100: #{tpu_custom_call.1} parent=92 // pred_region
          %s2692 = smul.u32 16, %s23
          %s2694 = ssub.s32 2048, 2048
          %2695 = vsyncadd %s2685, %s2694
          %s2696 = smul.addr %s2692, 128
          %s2697 = scalar_lea.hbm %s9, %s2696
          %s2698 = sshll.u32 %s2688, 4
          %s2699 = int_to_ptr.vmem [resolvable:$true] %s2698
          %2704 = dma.vmem_to_hbm [thread:$0]  %s2699, 2048, %s2697, %s2685, 128, 128, 8
        $region101: #{tpu_custom_call.1} parent=92 // pred_fallthru
          _
      $region93: #{tpu_custom_call.1} parent=5 // pred_fallthru
        _
      %p2705 = scmp.le.s32.totalorder 2, %s18
      // Predicated region
      $region102: #{tpu_custom_call.1} parent=5 // pred_check
        %p2706 = pneg %p2705
      $region103: #{tpu_custom_call.1} parent=5 // pred_check_branch
        %2708 = sbr.rel (%p2706) target = $region105
      $region104: #{tpu_custom_call.1} parent=5 // pred_region
        %s2709 = ssub.s32 %s18, 2
        // Predicated region
        $region106: #{tpu_custom_call.1} parent=104 // pred_check
          %p2710 = pneg %p241
        $region107: #{tpu_custom_call.1} parent=104 // pred_check_branch
          %2712 = sbr.rel (%p2710) target = $region109
        $region108: #{tpu_custom_call.1} parent=104 // pred_region
          %s2713 = sand.u32 %s226, 1
          %s2714 = scalar_lea.sflag [#allocation4], %s2713
          %s2715 = sand.u32 %s226, 1
          %s2716 = smul.addr %s2715, 128
          %s2717 = scalar_lea.vmem [#allocation3], %s2716
          %2718 = dma.done %s2714, 2048
        $region109: #{tpu_custom_call.1} parent=104 // pred_fallthru
          _
      $region105: #{tpu_custom_call.1} parent=5 // pred_fallthru
        _
    $region6: #{tpu_custom_call.1} parent=1 // loop_footer
      %s22 = sadd.s32 1, %s18
    $region7: #{tpu_custom_call.1} parent=1 // loop_footer_branch
      %17 = sbr.rel target = $region3
    $region8: #{tpu_custom_call.1} parent=1 // loop_exit
      _
    %2719 = vsyncpa [#allocation4], 1
    %s2720 = scalar_lea.sflag [#allocation4], 1
    %2721 = vsyncpa %s2720, 1

</llo_original>
